<compile_context>
chip_gen: v7x
topology: tpu7x:2x2x1
jax: 0.10.0
libtpu: 0.0.40
codegen_flags: <defaults>
</compile_context>

<pallas_src>
import functools

import jax
import jax.numpy as jnp
from jax.experimental import pallas as pl
from jax.experimental.pallas import tpu as pltpu

BN_EPS = 1e-5
LANES = 128  # fc2 output is computed into a 128-lane padded slab


# ------------------------------ Pallas kernel -------------------------------

def _emotion_lstm_kernel(x_ref,                         # (T*Bp, D)   bf16
                         wih_f_ref, whh_f_ref, b_f_ref,  # (D,4H),(H,4H) bf16, (1,4H) f32
                         wih_b_ref, whh_b_ref, b_b_ref,  # same for backward dir
                         w1_ref, b1_ref,                 # (2H,H) bf16 (BN folded), (1,H) f32
                         w2_ref, b2_ref,                 # (H,128) bf16 padded, (1,128) f32
                         o_ref):                         # (Bp, 128) f32
    H = whh_f_ref.shape[0]
    Bp = o_ref.shape[0]
    T = x_ref.shape[0] // Bp

    # ---- Hoisted input projections (no recurrent dependency): one big matmul
    # for the whole forward sequence, bias folded in once for all T steps.
    xg_f = (jnp.dot(x_ref[...], wih_f_ref[...], preferred_element_type=jnp.float32)
            + b_f_ref[...])                                   # (T*Bp, 4H) f32
    # Backward direction: only x[T-1] is ever needed (see module header).
    x_last = x_ref[(T - 1) * Bp:T * Bp, :]
    xg_b = (jnp.dot(x_last, wih_b_ref[...], preferred_element_type=jnp.float32)
            + b_b_ref[...])                                   # (Bp, 4H) f32

    # Hoist recurrent weights (fwd AND bwd) out of the time loop.
    whh_f = whh_f_ref[...]
    whh_b = whh_b_ref[...]

    def cell(xg_t, h, c, whh):
        # Gate columns pre-ordered (i, f, o, g): sigmoid over one contiguous
        # lane-aligned (Bp, 3H) slice, tanh only on the last H columns.
        gates = xg_t + jnp.dot(h.astype(whh.dtype), whh,
                               preferred_element_type=jnp.float32)
        sio = jax.nn.sigmoid(gates[:, :3 * H])
        g = jnp.tanh(gates[:, 3 * H:])
        i = sio[:, 0 * H:1 * H]
        f = sio[:, 1 * H:2 * H]
        o = sio[:, 2 * H:3 * H]
        c_new = f * c + i * g
        h_new = o * jnp.tanh(c_new)
        return h_new, c_new

    zeros = jnp.zeros((Bp, H), jnp.float32)
    h, c = zeros, zeros
    # Forward recurrence; T is small & static -> trace-time unroll, each step
    # only does the recurrent h @ W_hh matmul + gate math.
    for t in range(T):
        h, c = cell(xg_f[t * Bp:(t + 1) * Bp, :], h, c, whh_f)
    h_fwd = h

    # Backward direction: lstm_out[:, -1, H:] == one cell step on x[T-1] from
    # a zero initial state (PyTorch bi-LSTM reverse-scan semantics).
    h_bwd, _ = cell(xg_b, zeros, zeros, whh_b)

    # fc1 over concat([h_fwd, h_bwd]) without materializing the lane concat:
    # split the (2H, H) weight into its forward/backward halves.
    # (BatchNorm1d eval-mode scale/shift already folded into w1/b1; dropout is
    # identity in eval mode.)
    w_dt = w1_ref.dtype
    z1 = (jnp.dot(h_fwd.astype(w_dt), w1_ref[0:H, :],
                  preferred_element_type=jnp.float32)
          + jnp.dot(h_bwd.astype(w_dt), w1_ref[H:2 * H, :],
                    preferred_element_type=jnp.float32)
          + b1_ref[...])
    z1 = jnp.maximum(z1, 0.0)

    # fc2 into a 128-lane padded slab -> unmasked, lane-dense store.
    o_ref[...] = (jnp.dot(z1.astype(w2_ref.dtype), w2_ref[...],
                          preferred_element_type=jnp.float32)
                  + b2_ref[...])


# ------------------------------ wrapper --------------------------------------

def emotion_lstm_forward(params, x, *, num_classes):
    """x: (B, T, input_size) float32, batch_first like the PyTorch module."""
    B, T, D = x.shape
    assert num_classes <= LANES
    Bp = ((B + 7) // 8) * 8          # pad batch to a full sublane tile

    # time-major, batch-padded, flattened to a (T*Bp, D) sublane/lane-friendly
    # slab so the kernel's hoisted input projection is one matmul; cast the
    # MXU operand to bf16 here (accumulation stays f32 in-kernel).
    x_tbd = jnp.transpose(x, (1, 0, 2))                      # (T, B, D)
    x_tbd = jnp.pad(x_tbd, ((0, 0), (0, Bp - B), (0, 0)))    # (T, Bp, D)
    x2d = x_tbd.reshape(T * Bp, D).astype(jnp.bfloat16)

    out_pad = pl.pallas_call(
        _emotion_lstm_kernel,
        out_shape=jax.ShapeDtypeStruct((Bp, LANES), jnp.float32),
        in_specs=[pl.BlockSpec(memory_space=pltpu.MemorySpace.VMEM)] * 11,
        out_specs=pl.BlockSpec(memory_space=pltpu.MemorySpace.VMEM),
        # Whole model (<1 MiB) is VMEM resident; no grid needed at this size.
    )(x2d,
      params["wih_f"], params["whh_f"], params["b_f"],
      params["wih_b"], params["whh_b"], params["b_b"],
      params["w1"], params["b1"], params["w2"], params["b2"])

    return out_pad[:B, :num_classes]


# ------------------------- parameters (PyTorch layout) -----------------------

def init_raw_params(key, input_size, hidden_size, num_classes):
    """Deterministic PyTorch-layout parameters (LSTM gate order i,f,g,o)."""
    H, D, C = hidden_size, input_size, num_classes
    ks = jax.random.split(key, 16)

    def rnd(k, shape, scale=0.08):
        return (scale * jax.random.normal(k, shape)).astype(jnp.float32)

    return dict(
        w_ih_f=rnd(ks[0], (4 * H, D)), w_hh_f=rnd(ks[1], (4 * H, H)),
        b_ih_f=rnd(ks[2], (4 * H,)),   b_hh_f=rnd(ks[3], (4 * H,)),
        w_ih_b=rnd(ks[4], (4 * H, D)), w_hh_b=rnd(ks[5], (4 * H, H)),
        b_ih_b=rnd(ks[6], (4 * H,)),   b_hh_b=rnd(ks[7], (4 * H,)),
        bn_gamma=(1.0 + 0.1 * jax.random.normal(ks[8], (2 * H,))).astype(jnp.float32),
        bn_beta=rnd(ks[9], (2 * H,)),
        bn_mean=rnd(ks[10], (2 * H,)),
        bn_var=(1.0 + 0.1 * jax.random.uniform(ks[11], (2 * H,))).astype(jnp.float32),
        fc1_W=rnd(ks[12], (H, 2 * H)), fc1_b=rnd(ks[13], (H,)),
        fc2_W=rnd(ks[14], (C, H)),     fc2_b=rnd(ks[15], (C,)),
    )


def prepare_params(raw, num_classes):
    """One-time (outside the jitted forward) re-layout + folding + bf16 cast.

    * LSTM weights transposed to (K, 4H) and gate columns re-ordered from the
      PyTorch (i,f,g,o) to (i,f,o,g) so sigmoid covers one contiguous slice.
    * b_ih + b_hh pre-summed (added once to the hoisted input projection).
    * BatchNorm1d eval scale/shift folded into fc1.
    * fc2 padded to a 128-lane output slab.
    * Matmul operands cast to bf16; biases stay f32 (f32 accumulation).
    """
    H = raw["w_hh_f"].shape[1]
    bf16 = jnp.bfloat16

    def gate_cols(w):              # (4H, K) PyTorch -> (K, 4H), cols i,f,o,g
        wt = w.T
        return jnp.concatenate(
            [wt[:, 0:H], wt[:, H:2 * H], wt[:, 3 * H:4 * H], wt[:, 2 * H:3 * H]],
            axis=1)

    def gate_vec(b):               # (4H,) i,f,g,o -> i,f,o,g
        return jnp.concatenate([b[0:H], b[H:2 * H], b[3 * H:4 * H], b[2 * H:3 * H]])

    s = raw["bn_gamma"] / jnp.sqrt(raw["bn_var"] + BN_EPS)   # BN scale
    shift = raw["bn_beta"] - raw["bn_mean"] * s              # BN shift
    w1_t = raw["fc1_W"].T                                    # (2H, H)
    w1 = w1_t * s[:, None]                                   # fold BN scale into rows
    b1 = raw["fc1_b"] + shift @ w1_t                         # fold BN shift into bias
    w2 = jnp.zeros((H, LANES), jnp.float32).at[:, :num_classes].set(raw["fc2_W"].T)
    b2 = jnp.zeros((LANES,), jnp.float32).at[:num_classes].set(raw["fc2_b"])

    return dict(
        wih_f=gate_cols(raw["w_ih_f"]).astype(bf16),
        whh_f=gate_cols(raw["w_hh_f"]).astype(bf16),
        b_f=gate_vec(raw["b_ih_f"] + raw["b_hh_f"])[None, :],
        wih_b=gate_cols(raw["w_ih_b"]).astype(bf16),
        whh_b=gate_cols(raw["w_hh_b"]).astype(bf16),
        b_b=gate_vec(raw["b_ih_b"] + raw["b_hh_b"])[None, :],
        w1=w1.astype(bf16), b1=b1[None, :],
        w2=w2.astype(bf16), b2=b2[None, :],
    )


# ------------------------- pure-JAX reference (spec) -------------------------

def _dot_hi(a, b):
    return jnp.dot(a, b, precision=jax.lax.Precision.HIGHEST)


def reference_forward(raw, x):
    """Straight transcription of the PyTorch module (eval mode), f32 HIGHEST."""
    H = raw["w_hh_f"].shape[1]
    B, T, _ = x.shape

    def cell(x_t, h, c, w_ih, w_hh, b_ih, b_hh):
        gates = _dot_hi(x_t, w_ih.T) + b_ih + _dot_hi(h, w_hh.T) + b_hh
        i, f, g, o = jnp.split(gates, 4, axis=1)
        i = jax.nn.sigmoid(i); f = jax.nn.sigmoid(f)
        g = jnp.tanh(g);       o = jax.nn.sigmoid(o)
        c = f * c + i * g
        return o * jnp.tanh(c), c

    h = jnp.zeros((B, H)); c = jnp.zeros((B, H))
    for t in range(T):
        h, c = cell(x[:, t, :], h, c,
                    raw["w_ih_f"], raw["w_hh_f"], raw["b_ih_f"], raw["b_hh_f"])
    h_fwd = h

    hb = jnp.zeros((B, H)); cb = jnp.zeros((B, H))
    outs_b = [None] * T
    for t in range(T - 1, -1, -1):        # full backward scan, keep all outputs
        hb, cb = cell(x[:, t, :], hb, cb,
                      raw["w_ih_b"], raw["w_hh_b"], raw["b_ih_b"], raw["b_hh_b"])
        outs_b[t] = hb

    last = jnp.concatenate([h_fwd, outs_b[T - 1]], axis=1)   # lstm_out[:, -1, :]
    bn = ((last - raw["bn_mean"]) / jnp.sqrt(raw["bn_var"] + BN_EPS)
          * raw["bn_gamma"] + raw["bn_beta"])
    z = jnp.maximum(_dot_hi(bn, raw["fc1_W"].T) + raw["fc1_b"], 0.0)
    return _dot_hi(z, raw["fc2_W"].T) + raw["fc2_b"]


# ------------------------------------ main ------------------------------------

if __name__ == "__main__":
    INPUT_SIZE = 64
    HIDDEN = 128
    NUM_CLASSES = 8
    BATCH = 2
    SEQ = 8

    key = jax.random.PRNGKey(0)
    kp, kx = jax.random.split(key)
    raw = init_raw_params(kp, INPUT_SIZE, HIDDEN, NUM_CLASSES)
    params = prepare_params(raw, NUM_CLASSES)
    x = jax.random.normal(kx, (BATCH, SEQ, INPUT_SIZE), dtype=jnp.float32)

    fwd = jax.jit(functools.partial(emotion_lstm_forward, num_classes=NUM_CLASSES))
    logits = fwd(params, x)
    jax.block_until_ready(logits)
    assert logits.shape == (BATCH, NUM_CLASSES), logits.shape

    ref = reference_forward(raw, x)
    max_err = float(jnp.max(jnp.abs(logits - ref)))
    # bf16 MXU operands (f32 accumulation) vs. f32 HIGHEST reference.
    assert jnp.allclose(logits, ref, atol=3e-2, rtol=3e-2), max_err

    print("KERNEL_OK")
</pallas_src>

<mosaic_0001>
module attributes {stable_mosaic.version = 11 : i64} {
  func.func @_emotion_lstm_kernel(%arg0: memref<64x64xbf16, #tpu.memory_space<vmem>>, %arg1: memref<64x512xbf16, #tpu.memory_space<vmem>>, %arg2: memref<128x512xbf16, #tpu.memory_space<vmem>>, %arg3: memref<1x512xf32, #tpu.memory_space<vmem>>, %arg4: memref<64x512xbf16, #tpu.memory_space<vmem>>, %arg5: memref<128x512xbf16, #tpu.memory_space<vmem>>, %arg6: memref<1x512xf32, #tpu.memory_space<vmem>>, %arg7: memref<256x128xbf16, #tpu.memory_space<vmem>>, %arg8: memref<1x128xf32, #tpu.memory_space<vmem>>, %arg9: memref<128x128xbf16, #tpu.memory_space<vmem>>, %arg10: memref<1x128xf32, #tpu.memory_space<vmem>>, %arg11: memref<8x128xf32, #tpu.memory_space<vmem>>) attributes {dimension_semantics = [], scalar_prefetch = 0 : i64, scratch_operands = 0 : i64, tpu.core_type = #tpu.core_type<tc>} {
    %c0 = arith.constant 0 : index
    %c0_0 = arith.constant 0 : index
    %0 = vector.load %arg0[%c0, %c0_0] : memref<64x64xbf16, #tpu.memory_space<vmem>>, vector<64x64xbf16>
    %c0_1 = arith.constant 0 : index
    %c0_2 = arith.constant 0 : index
    %1 = vector.load %arg1[%c0_1, %c0_2] : memref<64x512xbf16, #tpu.memory_space<vmem>>, vector<64x512xbf16>
    %cst = arith.constant dense<0.000000e+00> : vector<64x512xf32>
    %2 = tpu.matmul %0, %1, %cst {dimension_numbers = #tpu.dot_dimension_numbers<[1], [0], [0], [1], [0, 0, 1, 1], [], []>} : vector<64x64xbf16>, vector<64x512xbf16>, vector<64x512xf32> -> vector<64x512xf32>
    %c0_3 = arith.constant 0 : index
    %c0_4 = arith.constant 0 : index
    %3 = vector.load %arg3[%c0_3, %c0_4] : memref<1x512xf32, #tpu.memory_space<vmem>>, vector<1x512xf32>
    %4 = vector.broadcast %3 : vector<1x512xf32> to vector<64x512xf32>
    %5 = arith.addf %2, %4 : vector<64x512xf32>
    %c56 = arith.constant 56 : index
    %c0_5 = arith.constant 0 : index
    %6 = vector.load %arg0[%c56, %c0_5] : memref<64x64xbf16, #tpu.memory_space<vmem>>, vector<8x64xbf16>
    %c0_6 = arith.constant 0 : index
    %c0_7 = arith.constant 0 : index
    %7 = vector.load %arg4[%c0_6, %c0_7] : memref<64x512xbf16, #tpu.memory_space<vmem>>, vector<64x512xbf16>
    %cst_8 = arith.constant dense<0.000000e+00> : vector<8x512xf32>
    %8 = tpu.matmul %6, %7, %cst_8 {dimension_numbers = #tpu.dot_dimension_numbers<[1], [0], [0], [1], [0, 0, 1, 1], [], []>} : vector<8x64xbf16>, vector<64x512xbf16>, vector<8x512xf32> -> vector<8x512xf32>
    %c0_9 = arith.constant 0 : index
    %c0_10 = arith.constant 0 : index
    %9 = vector.load %arg6[%c0_9, %c0_10] : memref<1x512xf32, #tpu.memory_space<vmem>>, vector<1x512xf32>
    %10 = vector.broadcast %9 : vector<1x512xf32> to vector<8x512xf32>
    %11 = arith.addf %8, %10 : vector<8x512xf32>
    %c0_11 = arith.constant 0 : index
    %c0_12 = arith.constant 0 : index
    %12 = vector.load %arg2[%c0_11, %c0_12] : memref<128x512xbf16, #tpu.memory_space<vmem>>, vector<128x512xbf16>
    %c0_13 = arith.constant 0 : index
    %c0_14 = arith.constant 0 : index
    %13 = vector.load %arg5[%c0_13, %c0_14] : memref<128x512xbf16, #tpu.memory_space<vmem>>, vector<128x512xbf16>
    %cst_15 = arith.constant 0.000000e+00 : f32
    %14 = vector.broadcast %cst_15 : f32 to vector<8x128xf32>
    %15 = vector.extract_strided_slice %5 {offsets = [0, 0], sizes = [8, 512], strides = [1, 1]} : vector<64x512xf32> to vector<8x512xf32>
    %16 = arith.truncf %14 : vector<8x128xf32> to vector<8x128xbf16>
    %cst_16 = arith.constant dense<0.000000e+00> : vector<8x512xf32>
    %17 = tpu.matmul %16, %12, %cst_16 {dimension_numbers = #tpu.dot_dimension_numbers<[1], [0], [0], [1], [0, 0, 1, 1], [], []>} : vector<8x128xbf16>, vector<128x512xbf16>, vector<8x512xf32> -> vector<8x512xf32>
    %18 = arith.addf %15, %17 : vector<8x512xf32>
    %19 = vector.extract_strided_slice %18 {offsets = [0, 0], sizes = [8, 384], strides = [1, 1]} : vector<8x512xf32> to vector<8x384xf32>
    %20 = arith.negf %19 : vector<8x384xf32>
    %21 = math.exp %20 : vector<8x384xf32>
    %cst_17 = arith.constant 1.000000e+00 : f32
    %22 = vector.broadcast %cst_17 : f32 to vector<8x384xf32>
    %23 = arith.addf %22, %21 : vector<8x384xf32>
    %24 = arith.divf %22, %23 : vector<8x384xf32>
    %25 = vector.extract_strided_slice %18 {offsets = [0, 384], sizes = [8, 128], strides = [1, 1]} : vector<8x512xf32> to vector<8x128xf32>
    %26 = math.tanh %25 : vector<8x128xf32>
    %27 = vector.extract_strided_slice %24 {offsets = [0, 0], sizes = [8, 128], strides = [1, 1]} : vector<8x384xf32> to vector<8x128xf32>
    %28 = vector.extract_strided_slice %24 {offsets = [0, 128], sizes = [8, 128], strides = [1, 1]} : vector<8x384xf32> to vector<8x128xf32>
    %29 = vector.extract_strided_slice %24 {offsets = [0, 256], sizes = [8, 128], strides = [1, 1]} : vector<8x384xf32> to vector<8x128xf32>
    %30 = arith.mulf %28, %14 : vector<8x128xf32>
    %31 = arith.mulf %27, %26 : vector<8x128xf32>
    %32 = arith.addf %30, %31 : vector<8x128xf32>
    %33 = math.tanh %32 : vector<8x128xf32>
    %34 = arith.mulf %29, %33 : vector<8x128xf32>
    %35 = vector.extract_strided_slice %5 {offsets = [8, 0], sizes = [8, 512], strides = [1, 1]} : vector<64x512xf32> to vector<8x512xf32>
    %36 = arith.truncf %34 : vector<8x128xf32> to vector<8x128xbf16>
    %cst_18 = arith.constant dense<0.000000e+00> : vector<8x512xf32>
    %37 = tpu.matmul %36, %12, %cst_18 {dimension_numbers = #tpu.dot_dimension_numbers<[1], [0], [0], [1], [0, 0, 1, 1], [], []>} : vector<8x128xbf16>, vector<128x512xbf16>, vector<8x512xf32> -> vector<8x512xf32>
    %38 = arith.addf %35, %37 : vector<8x512xf32>
    %39 = vector.extract_strided_slice %38 {offsets = [0, 0], sizes = [8, 384], strides = [1, 1]} : vector<8x512xf32> to vector<8x384xf32>
    %40 = arith.negf %39 : vector<8x384xf32>
    %41 = math.exp %40 : vector<8x384xf32>
    %cst_19 = arith.constant 1.000000e+00 : f32
    %42 = vector.broadcast %cst_19 : f32 to vector<8x384xf32>
    %43 = arith.addf %42, %41 : vector<8x384xf32>
    %44 = arith.divf %42, %43 : vector<8x384xf32>
    %45 = vector.extract_strided_slice %38 {offsets = [0, 384], sizes = [8, 128], strides = [1, 1]} : vector<8x512xf32> to vector<8x128xf32>
    %46 = math.tanh %45 : vector<8x128xf32>
    %47 = vector.extract_strided_slice %44 {offsets = [0, 0], sizes = [8, 128], strides = [1, 1]} : vector<8x384xf32> to vector<8x128xf32>
    %48 = vector.extract_strided_slice %44 {offsets = [0, 128], sizes = [8, 128], strides = [1, 1]} : vector<8x384xf32> to vector<8x128xf32>
    %49 = vector.extract_strided_slice %44 {offsets = [0, 256], sizes = [8, 128], strides = [1, 1]} : vector<8x384xf32> to vector<8x128xf32>
    %50 = arith.mulf %48, %32 : vector<8x128xf32>
    %51 = arith.mulf %47, %46 : vector<8x128xf32>
    %52 = arith.addf %50, %51 : vector<8x128xf32>
    %53 = math.tanh %52 : vector<8x128xf32>
    %54 = arith.mulf %49, %53 : vector<8x128xf32>
    %55 = vector.extract_strided_slice %5 {offsets = [16, 0], sizes = [8, 512], strides = [1, 1]} : vector<64x512xf32> to vector<8x512xf32>
    %56 = arith.truncf %54 : vector<8x128xf32> to vector<8x128xbf16>
    %cst_20 = arith.constant dense<0.000000e+00> : vector<8x512xf32>
    %57 = tpu.matmul %56, %12, %cst_20 {dimension_numbers = #tpu.dot_dimension_numbers<[1], [0], [0], [1], [0, 0, 1, 1], [], []>} : vector<8x128xbf16>, vector<128x512xbf16>, vector<8x512xf32> -> vector<8x512xf32>
    %58 = arith.addf %55, %57 : vector<8x512xf32>
    %59 = vector.extract_strided_slice %58 {offsets = [0, 0], sizes = [8, 384], strides = [1, 1]} : vector<8x512xf32> to vector<8x384xf32>
    %60 = arith.negf %59 : vector<8x384xf32>
    %61 = math.exp %60 : vector<8x384xf32>
    %cst_21 = arith.constant 1.000000e+00 : f32
    %62 = vector.broadcast %cst_21 : f32 to vector<8x384xf32>
    %63 = arith.addf %62, %61 : vector<8x384xf32>
    %64 = arith.divf %62, %63 : vector<8x384xf32>
    %65 = vector.extract_strided_slice %58 {offsets = [0, 384], sizes = [8, 128], strides = [1, 1]} : vector<8x512xf32> to vector<8x128xf32>
    %66 = math.tanh %65 : vector<8x128xf32>
    %67 = vector.extract_strided_slice %64 {offsets = [0, 0], sizes = [8, 128], strides = [1, 1]} : vector<8x384xf32> to vector<8x128xf32>
    %68 = vector.extract_strided_slice %64 {offsets = [0, 128], sizes = [8, 128], strides = [1, 1]} : vector<8x384xf32> to vector<8x128xf32>
    %69 = vector.extract_strided_slice %64 {offsets = [0, 256], sizes = [8, 128], strides = [1, 1]} : vector<8x384xf32> to vector<8x128xf32>
    %70 = arith.mulf %68, %52 : vector<8x128xf32>
    %71 = arith.mulf %67, %66 : vector<8x128xf32>
    %72 = arith.addf %70, %71 : vector<8x128xf32>
    %73 = math.tanh %72 : vector<8x128xf32>
    %74 = arith.mulf %69, %73 : vector<8x128xf32>
    %75 = vector.extract_strided_slice %5 {offsets = [24, 0], sizes = [8, 512], strides = [1, 1]} : vector<64x512xf32> to vector<8x512xf32>
    %76 = arith.truncf %74 : vector<8x128xf32> to vector<8x128xbf16>
    %cst_22 = arith.constant dense<0.000000e+00> : vector<8x512xf32>
    %77 = tpu.matmul %76, %12, %cst_22 {dimension_numbers = #tpu.dot_dimension_numbers<[1], [0], [0], [1], [0, 0, 1, 1], [], []>} : vector<8x128xbf16>, vector<128x512xbf16>, vector<8x512xf32> -> vector<8x512xf32>
    %78 = arith.addf %75, %77 : vector<8x512xf32>
    %79 = vector.extract_strided_slice %78 {offsets = [0, 0], sizes = [8, 384], strides = [1, 1]} : vector<8x512xf32> to vector<8x384xf32>
    %80 = arith.negf %79 : vector<8x384xf32>
    %81 = math.exp %80 : vector<8x384xf32>
    %cst_23 = arith.constant 1.000000e+00 : f32
    %82 = vector.broadcast %cst_23 : f32 to vector<8x384xf32>
    %83 = arith.addf %82, %81 : vector<8x384xf32>
    %84 = arith.divf %82, %83 : vector<8x384xf32>
    %85 = vector.extract_strided_slice %78 {offsets = [0, 384], sizes = [8, 128], strides = [1, 1]} : vector<8x512xf32> to vector<8x128xf32>
    %86 = math.tanh %85 : vector<8x128xf32>
    %87 = vector.extract_strided_slice %84 {offsets = [0, 0], sizes = [8, 128], strides = [1, 1]} : vector<8x384xf32> to vector<8x128xf32>
    %88 = vector.extract_strided_slice %84 {offsets = [0, 128], sizes = [8, 128], strides = [1, 1]} : vector<8x384xf32> to vector<8x128xf32>
    %89 = vector.extract_strided_slice %84 {offsets = [0, 256], sizes = [8, 128], strides = [1, 1]} : vector<8x384xf32> to vector<8x128xf32>
    %90 = arith.mulf %88, %72 : vector<8x128xf32>
    %91 = arith.mulf %87, %86 : vector<8x128xf32>
    %92 = arith.addf %90, %91 : vector<8x128xf32>
    %93 = math.tanh %92 : vector<8x128xf32>
    %94 = arith.mulf %89, %93 : vector<8x128xf32>
    %95 = vector.extract_strided_slice %5 {offsets = [32, 0], sizes = [8, 512], strides = [1, 1]} : vector<64x512xf32> to vector<8x512xf32>
    %96 = arith.truncf %94 : vector<8x128xf32> to vector<8x128xbf16>
    %cst_24 = arith.constant dense<0.000000e+00> : vector<8x512xf32>
    %97 = tpu.matmul %96, %12, %cst_24 {dimension_numbers = #tpu.dot_dimension_numbers<[1], [0], [0], [1], [0, 0, 1, 1], [], []>} : vector<8x128xbf16>, vector<128x512xbf16>, vector<8x512xf32> -> vector<8x512xf32>
    %98 = arith.addf %95, %97 : vector<8x512xf32>
    %99 = vector.extract_strided_slice %98 {offsets = [0, 0], sizes = [8, 384], strides = [1, 1]} : vector<8x512xf32> to vector<8x384xf32>
    %100 = arith.negf %99 : vector<8x384xf32>
    %101 = math.exp %100 : vector<8x384xf32>
    %cst_25 = arith.constant 1.000000e+00 : f32
    %102 = vector.broadcast %cst_25 : f32 to vector<8x384xf32>
    %103 = arith.addf %102, %101 : vector<8x384xf32>
    %104 = arith.divf %102, %103 : vector<8x384xf32>
    %105 = vector.extract_strided_slice %98 {offsets = [0, 384], sizes = [8, 128], strides = [1, 1]} : vector<8x512xf32> to vector<8x128xf32>
    %106 = math.tanh %105 : vector<8x128xf32>
    %107 = vector.extract_strided_slice %104 {offsets = [0, 0], sizes = [8, 128], strides = [1, 1]} : vector<8x384xf32> to vector<8x128xf32>
    %108 = vector.extract_strided_slice %104 {offsets = [0, 128], sizes = [8, 128], strides = [1, 1]} : vector<8x384xf32> to vector<8x128xf32>
    %109 = vector.extract_strided_slice %104 {offsets = [0, 256], sizes = [8, 128], strides = [1, 1]} : vector<8x384xf32> to vector<8x128xf32>
    %110 = arith.mulf %108, %92 : vector<8x128xf32>
    %111 = arith.mulf %107, %106 : vector<8x128xf32>
    %112 = arith.addf %110, %111 : vector<8x128xf32>
    %113 = math.tanh %112 : vector<8x128xf32>
    %114 = arith.mulf %109, %113 : vector<8x128xf32>
    %115 = vector.extract_strided_slice %5 {offsets = [40, 0], sizes = [8, 512], strides = [1, 1]} : vector<64x512xf32> to vector<8x512xf32>
    %116 = arith.truncf %114 : vector<8x128xf32> to vector<8x128xbf16>
    %cst_26 = arith.constant dense<0.000000e+00> : vector<8x512xf32>
    %117 = tpu.matmul %116, %12, %cst_26 {dimension_numbers = #tpu.dot_dimension_numbers<[1], [0], [0], [1], [0, 0, 1, 1], [], []>} : vector<8x128xbf16>, vector<128x512xbf16>, vector<8x512xf32> -> vector<8x512xf32>
    %118 = arith.addf %115, %117 : vector<8x512xf32>
    %119 = vector.extract_strided_slice %118 {offsets = [0, 0], sizes = [8, 384], strides = [1, 1]} : vector<8x512xf32> to vector<8x384xf32>
    %120 = arith.negf %119 : vector<8x384xf32>
    %121 = math.exp %120 : vector<8x384xf32>
    %cst_27 = arith.constant 1.000000e+00 : f32
    %122 = vector.broadcast %cst_27 : f32 to vector<8x384xf32>
    %123 = arith.addf %122, %121 : vector<8x384xf32>
    %124 = arith.divf %122, %123 : vector<8x384xf32>
    %125 = vector.extract_strided_slice %118 {offsets = [0, 384], sizes = [8, 128], strides = [1, 1]} : vector<8x512xf32> to vector<8x128xf32>
    %126 = math.tanh %125 : vector<8x128xf32>
    %127 = vector.extract_strided_slice %124 {offsets = [0, 0], sizes = [8, 128], strides = [1, 1]} : vector<8x384xf32> to vector<8x128xf32>
    %128 = vector.extract_strided_slice %124 {offsets = [0, 128], sizes = [8, 128], strides = [1, 1]} : vector<8x384xf32> to vector<8x128xf32>
    %129 = vector.extract_strided_slice %124 {offsets = [0, 256], sizes = [8, 128], strides = [1, 1]} : vector<8x384xf32> to vector<8x128xf32>
    %130 = arith.mulf %128, %112 : vector<8x128xf32>
    %131 = arith.mulf %127, %126 : vector<8x128xf32>
    %132 = arith.addf %130, %131 : vector<8x128xf32>
    %133 = math.tanh %132 : vector<8x128xf32>
    %134 = arith.mulf %129, %133 : vector<8x128xf32>
    %135 = vector.extract_strided_slice %5 {offsets = [48, 0], sizes = [8, 512], strides = [1, 1]} : vector<64x512xf32> to vector<8x512xf32>
    %136 = arith.truncf %134 : vector<8x128xf32> to vector<8x128xbf16>
    %cst_28 = arith.constant dense<0.000000e+00> : vector<8x512xf32>
    %137 = tpu.matmul %136, %12, %cst_28 {dimension_numbers = #tpu.dot_dimension_numbers<[1], [0], [0], [1], [0, 0, 1, 1], [], []>} : vector<8x128xbf16>, vector<128x512xbf16>, vector<8x512xf32> -> vector<8x512xf32>
    %138 = arith.addf %135, %137 : vector<8x512xf32>
    %139 = vector.extract_strided_slice %138 {offsets = [0, 0], sizes = [8, 384], strides = [1, 1]} : vector<8x512xf32> to vector<8x384xf32>
    %140 = arith.negf %139 : vector<8x384xf32>
    %141 = math.exp %140 : vector<8x384xf32>
    %cst_29 = arith.constant 1.000000e+00 : f32
    %142 = vector.broadcast %cst_29 : f32 to vector<8x384xf32>
    %143 = arith.addf %142, %141 : vector<8x384xf32>
    %144 = arith.divf %142, %143 : vector<8x384xf32>
    %145 = vector.extract_strided_slice %138 {offsets = [0, 384], sizes = [8, 128], strides = [1, 1]} : vector<8x512xf32> to vector<8x128xf32>
    %146 = math.tanh %145 : vector<8x128xf32>
    %147 = vector.extract_strided_slice %144 {offsets = [0, 0], sizes = [8, 128], strides = [1, 1]} : vector<8x384xf32> to vector<8x128xf32>
    %148 = vector.extract_strided_slice %144 {offsets = [0, 128], sizes = [8, 128], strides = [1, 1]} : vector<8x384xf32> to vector<8x128xf32>
    %149 = vector.extract_strided_slice %144 {offsets = [0, 256], sizes = [8, 128], strides = [1, 1]} : vector<8x384xf32> to vector<8x128xf32>
    %150 = arith.mulf %148, %132 : vector<8x128xf32>
    %151 = arith.mulf %147, %146 : vector<8x128xf32>
    %152 = arith.addf %150, %151 : vector<8x128xf32>
    %153 = math.tanh %152 : vector<8x128xf32>
    %154 = arith.mulf %149, %153 : vector<8x128xf32>
    %155 = vector.extract_strided_slice %5 {offsets = [56, 0], sizes = [8, 512], strides = [1, 1]} : vector<64x512xf32> to vector<8x512xf32>
    %156 = arith.truncf %154 : vector<8x128xf32> to vector<8x128xbf16>
    %cst_30 = arith.constant dense<0.000000e+00> : vector<8x512xf32>
    %157 = tpu.matmul %156, %12, %cst_30 {dimension_numbers = #tpu.dot_dimension_numbers<[1], [0], [0], [1], [0, 0, 1, 1], [], []>} : vector<8x128xbf16>, vector<128x512xbf16>, vector<8x512xf32> -> vector<8x512xf32>
    %158 = arith.addf %155, %157 : vector<8x512xf32>
    %159 = vector.extract_strided_slice %158 {offsets = [0, 0], sizes = [8, 384], strides = [1, 1]} : vector<8x512xf32> to vector<8x384xf32>
    %160 = arith.negf %159 : vector<8x384xf32>
    %161 = math.exp %160 : vector<8x384xf32>
    %cst_31 = arith.constant 1.000000e+00 : f32
    %162 = vector.broadcast %cst_31 : f32 to vector<8x384xf32>
    %163 = arith.addf %162, %161 : vector<8x384xf32>
    %164 = arith.divf %162, %163 : vector<8x384xf32>
    %165 = vector.extract_strided_slice %158 {offsets = [0, 384], sizes = [8, 128], strides = [1, 1]} : vector<8x512xf32> to vector<8x128xf32>
    %166 = math.tanh %165 : vector<8x128xf32>
    %167 = vector.extract_strided_slice %164 {offsets = [0, 0], sizes = [8, 128], strides = [1, 1]} : vector<8x384xf32> to vector<8x128xf32>
    %168 = vector.extract_strided_slice %164 {offsets = [0, 128], sizes = [8, 128], strides = [1, 1]} : vector<8x384xf32> to vector<8x128xf32>
    %169 = vector.extract_strided_slice %164 {offsets = [0, 256], sizes = [8, 128], strides = [1, 1]} : vector<8x384xf32> to vector<8x128xf32>
    %170 = arith.mulf %168, %152 : vector<8x128xf32>
    %171 = arith.mulf %167, %166 : vector<8x128xf32>
    %172 = arith.addf %170, %171 : vector<8x128xf32>
    %173 = math.tanh %172 : vector<8x128xf32>
    %174 = arith.mulf %169, %173 : vector<8x128xf32>
    %175 = arith.truncf %14 : vector<8x128xf32> to vector<8x128xbf16>
    %cst_32 = arith.constant dense<0.000000e+00> : vector<8x512xf32>
    %176 = tpu.matmul %175, %13, %cst_32 {dimension_numbers = #tpu.dot_dimension_numbers<[1], [0], [0], [1], [0, 0, 1, 1], [], []>} : vector<8x128xbf16>, vector<128x512xbf16>, vector<8x512xf32> -> vector<8x512xf32>
    %177 = arith.addf %11, %176 : vector<8x512xf32>
    %178 = vector.extract_strided_slice %177 {offsets = [0, 0], sizes = [8, 384], strides = [1, 1]} : vector<8x512xf32> to vector<8x384xf32>
    %179 = arith.negf %178 : vector<8x384xf32>
    %180 = math.exp %179 : vector<8x384xf32>
    %cst_33 = arith.constant 1.000000e+00 : f32
    %181 = vector.broadcast %cst_33 : f32 to vector<8x384xf32>
    %182 = arith.addf %181, %180 : vector<8x384xf32>
    %183 = arith.divf %181, %182 : vector<8x384xf32>
    %184 = vector.extract_strided_slice %177 {offsets = [0, 384], sizes = [8, 128], strides = [1, 1]} : vector<8x512xf32> to vector<8x128xf32>
    %185 = math.tanh %184 : vector<8x128xf32>
    %186 = vector.extract_strided_slice %183 {offsets = [0, 0], sizes = [8, 128], strides = [1, 1]} : vector<8x384xf32> to vector<8x128xf32>
    %187 = vector.extract_strided_slice %183 {offsets = [0, 128], sizes = [8, 128], strides = [1, 1]} : vector<8x384xf32> to vector<8x128xf32>
    %188 = vector.extract_strided_slice %183 {offsets = [0, 256], sizes = [8, 128], strides = [1, 1]} : vector<8x384xf32> to vector<8x128xf32>
    %189 = arith.mulf %187, %14 : vector<8x128xf32>
    %190 = arith.mulf %186, %185 : vector<8x128xf32>
    %191 = arith.addf %189, %190 : vector<8x128xf32>
    %192 = math.tanh %191 : vector<8x128xf32>
    %193 = arith.mulf %188, %192 : vector<8x128xf32>
    %194 = arith.truncf %174 : vector<8x128xf32> to vector<8x128xbf16>
    %c0_34 = arith.constant 0 : index
    %c0_35 = arith.constant 0 : index
    %195 = vector.load %arg7[%c0_34, %c0_35] : memref<256x128xbf16, #tpu.memory_space<vmem>>, vector<128x128xbf16>
    %cst_36 = arith.constant dense<0.000000e+00> : vector<8x128xf32>
    %196 = tpu.matmul %194, %195, %cst_36 {dimension_numbers = #tpu.dot_dimension_numbers<[1], [0], [0], [1], [0, 0, 1, 1], [], []>} : vector<8x128xbf16>, vector<128x128xbf16>, vector<8x128xf32> -> vector<8x128xf32>
    %197 = arith.truncf %193 : vector<8x128xf32> to vector<8x128xbf16>
    %c128 = arith.constant 128 : index
    %c0_37 = arith.constant 0 : index
    %198 = vector.load %arg7[%c128, %c0_37] : memref<256x128xbf16, #tpu.memory_space<vmem>>, vector<128x128xbf16>
    %cst_38 = arith.constant dense<0.000000e+00> : vector<8x128xf32>
    %199 = tpu.matmul %197, %198, %cst_38 {dimension_numbers = #tpu.dot_dimension_numbers<[1], [0], [0], [1], [0, 0, 1, 1], [], []>} : vector<8x128xbf16>, vector<128x128xbf16>, vector<8x128xf32> -> vector<8x128xf32>
    %200 = arith.addf %196, %199 : vector<8x128xf32>
    %c0_39 = arith.constant 0 : index
    %c0_40 = arith.constant 0 : index
    %201 = vector.load %arg8[%c0_39, %c0_40] : memref<1x128xf32, #tpu.memory_space<vmem>>, vector<1x128xf32>
    %202 = vector.broadcast %201 : vector<1x128xf32> to vector<8x128xf32>
    %203 = arith.addf %200, %202 : vector<8x128xf32>
    %cst_41 = arith.constant 0.000000e+00 : f32
    %204 = vector.broadcast %cst_41 : f32 to vector<8x128xf32>
    %205 = arith.maximumf %203, %204 : vector<8x128xf32>
    %206 = arith.truncf %205 : vector<8x128xf32> to vector<8x128xbf16>
    %c0_42 = arith.constant 0 : index
    %c0_43 = arith.constant 0 : index
    %207 = vector.load %arg9[%c0_42, %c0_43] : memref<128x128xbf16, #tpu.memory_space<vmem>>, vector<128x128xbf16>
    %cst_44 = arith.constant dense<0.000000e+00> : vector<8x128xf32>
    %208 = tpu.matmul %206, %207, %cst_44 {dimension_numbers = #tpu.dot_dimension_numbers<[1], [0], [0], [1], [0, 0, 1, 1], [], []>} : vector<8x128xbf16>, vector<128x128xbf16>, vector<8x128xf32> -> vector<8x128xf32>
    %c0_45 = arith.constant 0 : index
    %c0_46 = arith.constant 0 : index
    %209 = vector.load %arg10[%c0_45, %c0_46] : memref<1x128xf32, #tpu.memory_space<vmem>>, vector<1x128xf32>
    %210 = vector.broadcast %209 : vector<1x128xf32> to vector<8x128xf32>
    %211 = arith.addf %208, %210 : vector<8x128xf32>
    %c0_47 = arith.constant 0 : index
    %c0_48 = arith.constant 0 : index
    %212 = vector.load %arg11[%c0_47, %c0_48] : memref<8x128xf32, #tpu.memory_space<vmem>>, vector<8x128xf32>
    tpu.vector_store %arg11[%c0_47, %c0_48], %211 {strides = array<i32>} : memref<8x128xf32, #tpu.memory_space<vmem>>, vector<8x128xf32>,
    return
  }
}

</mosaic_0001>

<llo_original>
// kernel: emotion_lstm_forward.1
$region0: #{emotion_lstm_forward.1}
  #allocation0 [shape = 'u32[]', space=smem, size = 0x4, offset = 0x4, fixed_abs, tag = 'smem constant byte address 0x4 - core index']
  #allocation1 [shape = 'u32[144,128]{1,0:T(1,128)}', space=vmem, size = 0x12000, scoped, tag = 'internal scratch']
  %s0 = inlined_call_operand.vmem [shape: bf16[64,64], index: 0, kind: input, shape index: {}]
  %s1 = inlined_call_operand.hbm [shape: bf16[64,512], index: 1, kind: input, shape index: {}]
  %s2 = inlined_call_operand.hbm [shape: bf16[128,512], index: 2, kind: input, shape index: {}]
  %s3 = inlined_call_operand.vmem [shape: f32[1,512], index: 3, kind: input, shape index: {}]
  %s4 = inlined_call_operand.hbm [shape: bf16[64,512], index: 4, kind: input, shape index: {}]
  %s5 = inlined_call_operand.hbm [shape: bf16[128,512], index: 5, kind: input, shape index: {}]
  %s6 = inlined_call_operand.vmem [shape: f32[1,512], index: 6, kind: input, shape index: {}]
  %s7 = inlined_call_operand.hbm [shape: bf16[256,128], index: 7, kind: input, shape index: {}]
  %s8 = inlined_call_operand.vmem [shape: f32[1,128], index: 8, kind: input, shape index: {}]
  %s9 = inlined_call_operand.vmem [shape: bf16[128,128], index: 9, kind: input, shape index: {}]
  %s10 = inlined_call_operand.vmem [shape: f32[1,128], index: 10, kind: input, shape index: {}]
  %s11 = inlined_call_operand.vmem [shape: f32[8,128], index: 11, kind: output, shape index: {}]
  %s12 = sld [smem:[#allocation0]]
  $region74: #{emotion_lstm_forward.1} parent=0
    _
  %s14 = ssub.s32 1, %s12
  %s15 = scalar_select 0, %s14, %s12
  $region1: #{emotion_lstm_forward.1} parent=0
    #allocation2 [shape = 'u8[65536]{0}', space=vmem, size = 0x10000, scoped, tag = 'input window, operand 1, single buffered']
    #allocation3 [shape = 's32[1]{0}', space=sflag, size = 0x4, scoped, tag = 'scoped memory for emotion_lstm_forward.1']
    #allocation4 [shape = 'u8[131072]{0}', space=vmem, size = 0x20000, scoped, tag = 'input window, operand 2, single buffered']
    #allocation5 [shape = 's32[1]{0}', space=sflag, size = 0x4, scoped, tag = 'scoped memory for emotion_lstm_forward.1']
    #allocation6 [shape = 'u8[65536]{0}', space=vmem, size = 0x10000, scoped, tag = 'input window, operand 4, single buffered']
    #allocation7 [shape = 'u8[131072]{0}', space=vmem, size = 0x20000, scoped, tag = 'input window, operand 5, single buffered']
    #allocation8 [shape = 's32[1]{0}', space=sflag, size = 0x4, scoped, tag = 'scoped memory for emotion_lstm_forward.1']
    #allocation9 [shape = 'u8[65536]{0}', space=vmem, size = 0x10000, scoped, tag = 'input window, operand 7, single buffered']
    %16 = vsyncpa [#allocation3], 0
    %17 = vsyncpa [#allocation5], 0
    %18 = vsyncpa [#allocation8], 0
    // Predicated region
    $region2: #{emotion_lstm_forward.1} parent=1 // pred_check
      _
    $region3: #{emotion_lstm_forward.1} parent=1 // pred_check_branch
      %20 = sbr.rel (0) target = $region5
    $region4: #{emotion_lstm_forward.1} parent=1 // pred_region
      _
    $region5: #{emotion_lstm_forward.1} parent=1 // pred_fallthru
      _
    // Predicated region
    $region6: #{emotion_lstm_forward.1} parent=1 // pred_check
      _
    $region7: #{emotion_lstm_forward.1} parent=1 // pred_check_branch
      %22 = sbr.rel (0) target = $region9
    $region8: #{emotion_lstm_forward.1} parent=1 // pred_region
      %s24 = ssub.s32 2048, 2048
      %25 = vsyncadd [#allocation3], %s24
      %s26 = sshll.u32 [#allocation2], 4
      %s27 = int_to_ptr.vmem [resolvable:$true] %s26
      %32 = dma.hbm_to_vmem [thread:$0]  %s1, 2048, %s27, [#allocation3], 256, 256, 16
    $region9: #{emotion_lstm_forward.1} parent=1 // pred_fallthru
      _
    // Predicated region
    $region10: #{emotion_lstm_forward.1} parent=1 // pred_check
      _
    $region11: #{emotion_lstm_forward.1} parent=1 // pred_check_branch
      %34 = sbr.rel (0) target = $region13
    $region12: #{emotion_lstm_forward.1} parent=1 // pred_region
      %s36 = ssub.s32 4096, 4096
      %37 = vsyncadd [#allocation5], %s36
      %s38 = sshll.u32 [#allocation4], 4
      %s39 = int_to_ptr.vmem [resolvable:$true] %s38
      %44 = dma.hbm_to_vmem [thread:$0]  %s2, 4096, %s39, [#allocation5], 256, 256, 16
    $region13: #{emotion_lstm_forward.1} parent=1 // pred_fallthru
      _
    // Predicated region
    $region14: #{emotion_lstm_forward.1} parent=1 // pred_check
      _
    $region15: #{emotion_lstm_forward.1} parent=1 // pred_check_branch
      %46 = sbr.rel (0) target = $region17
    $region16: #{emotion_lstm_forward.1} parent=1 // pred_region
      _
    $region17: #{emotion_lstm_forward.1} parent=1 // pred_fallthru
      _
    // Predicated region
    $region18: #{emotion_lstm_forward.1} parent=1 // pred_check
      _
    $region19: #{emotion_lstm_forward.1} parent=1 // pred_check_branch
      %48 = sbr.rel (0) target = $region21
    $region20: #{emotion_lstm_forward.1} parent=1 // pred_region
      %s50 = ssub.s32 2048, 2048
      %51 = vsyncadd [#allocation5], %s50
      %s52 = sshll.u32 [#allocation6], 4
      %s53 = int_to_ptr.vmem [resolvable:$true] %s52
      %58 = dma.hbm_to_vmem [thread:$0]  %s4, 2048, %s53, [#allocation5], 256, 256, 16
    $region21: #{emotion_lstm_forward.1} parent=1 // pred_fallthru
      _
    // Predicated region
    $region22: #{emotion_lstm_forward.1} parent=1 // pred_check
      _
    $region23: #{emotion_lstm_forward.1} parent=1 // pred_check_branch
      %60 = sbr.rel (0) target = $region25
    $region24: #{emotion_lstm_forward.1} parent=1 // pred_region
      %s62 = ssub.s32 4096, 4096
      %63 = vsyncadd [#allocation8], %s62
      %s64 = sshll.u32 [#allocation7], 4
      %s65 = int_to_ptr.vmem [resolvable:$true] %s64
      %70 = dma.hbm_to_vmem [thread:$0]  %s5, 4096, %s65, [#allocation8], 256, 256, 16
    $region25: #{emotion_lstm_forward.1} parent=1 // pred_fallthru
      _
    // Predicated region
    $region26: #{emotion_lstm_forward.1} parent=1 // pred_check
      _
    $region27: #{emotion_lstm_forward.1} parent=1 // pred_check_branch
      %72 = sbr.rel (0) target = $region29
    $region28: #{emotion_lstm_forward.1} parent=1 // pred_region
      _
    $region29: #{emotion_lstm_forward.1} parent=1 // pred_fallthru
      _
    // Predicated region
    $region30: #{emotion_lstm_forward.1} parent=1 // pred_check
      _
    $region31: #{emotion_lstm_forward.1} parent=1 // pred_check_branch
      %74 = sbr.rel (0) target = $region33
    $region32: #{emotion_lstm_forward.1} parent=1 // pred_region
      %s76 = ssub.s32 2048, 2048
      %77 = vsyncadd [#allocation8], %s76
      %s78 = sshll.u32 [#allocation9], 4
      %s79 = int_to_ptr.vmem [resolvable:$true] %s78
      %84 = dma.hbm_to_vmem [thread:$0]  %s7, 2048, %s79, [#allocation8], 64, 64, 4
    $region33: #{emotion_lstm_forward.1} parent=1 // pred_fallthru
      _
    // Predicated region
    $region34: #{emotion_lstm_forward.1} parent=1 // pred_check
      _
    $region35: #{emotion_lstm_forward.1} parent=1 // pred_check_branch
      %86 = sbr.rel (0) target = $region37
    $region36: #{emotion_lstm_forward.1} parent=1 // pred_region
      _
    $region37: #{emotion_lstm_forward.1} parent=1 // pred_fallthru
      _
    // Predicated region
    $region38: #{emotion_lstm_forward.1} parent=1 // pred_check
      _
    $region39: #{emotion_lstm_forward.1} parent=1 // pred_check_branch
      %88 = sbr.rel (0) target = $region41
    $region40: #{emotion_lstm_forward.1} parent=1 // pred_region
      _
    $region41: #{emotion_lstm_forward.1} parent=1 // pred_fallthru
      _
    // Predicated region
    $region42: #{emotion_lstm_forward.1} parent=1 // pred_check
      _
    $region43: #{emotion_lstm_forward.1} parent=1 // pred_check_branch
      %90 = sbr.rel (0) target = $region45
    $region44: #{emotion_lstm_forward.1} parent=1 // pred_region
      _
    $region45: #{emotion_lstm_forward.1} parent=1 // pred_fallthru
      _
    // Predicated region
    $region46: #{emotion_lstm_forward.1} parent=1 // pred_check
      _
    $region47: #{emotion_lstm_forward.1} parent=1 // pred_check_branch
      %92 = sbr.rel (0) target = $region49
    $region48: #{emotion_lstm_forward.1} parent=1 // pred_region
      %93 = dma.done [#allocation3], 2048
    $region49: #{emotion_lstm_forward.1} parent=1 // pred_fallthru
      _
    // Predicated region
    $region50: #{emotion_lstm_forward.1} parent=1 // pred_check
      _
    $region51: #{emotion_lstm_forward.1} parent=1 // pred_check_branch
      %95 = sbr.rel (0) target = $region53
    $region52: #{emotion_lstm_forward.1} parent=1 // pred_region
      %96 = dma.done [#allocation5], 4096
    $region53: #{emotion_lstm_forward.1} parent=1 // pred_fallthru
      _
    // Predicated region
    $region54: #{emotion_lstm_forward.1} parent=1 // pred_check
      _
    $region55: #{emotion_lstm_forward.1} parent=1 // pred_check_branch
      %98 = sbr.rel (0) target = $region57
    $region56: #{emotion_lstm_forward.1} parent=1 // pred_region
      %99 = dma.done [#allocation5], 2048
    $region57: #{emotion_lstm_forward.1} parent=1 // pred_fallthru
      _
    // Predicated region
    $region58: #{emotion_lstm_forward.1} parent=1 // pred_check
      _
    $region59: #{emotion_lstm_forward.1} parent=1 // pred_check_branch
      %101 = sbr.rel (0) target = $region61
    $region60: #{emotion_lstm_forward.1} parent=1 // pred_region
      %102 = dma.done [#allocation8], 4096
    $region61: #{emotion_lstm_forward.1} parent=1 // pred_fallthru
      _
    // Predicated region
    $region62: #{emotion_lstm_forward.1} parent=1 // pred_check
      _
    $region63: #{emotion_lstm_forward.1} parent=1 // pred_check_branch
      %104 = sbr.rel (0) target = $region65
    $region64: #{emotion_lstm_forward.1} parent=1 // pred_region
      %105 = dma.done [#allocation8], 2048
    $region65: #{emotion_lstm_forward.1} parent=1 // pred_fallthru
      _
    %v107 = vld [vmem:[%s0] sm:$0xf]
    %v108 = vld [vmem:[%s0 + $0x4] sm:$0xf]
    %v109 = vld [vmem:[%s0 + $0x8] sm:$0xf]
    %v110 = vld [vmem:[%s0 + $0xc] sm:$0xf]
    %v111 = vld [vmem:[%s0 + $0x10] sm:$0xf]
    %v112 = vld [vmem:[%s0 + $0x14] sm:$0xf]
    %v113 = vld [vmem:[%s0 + $0x18] sm:$0xf]
    %v114 = vld [vmem:[%s0 + $0x1c] sm:$0xf]
    %v115 = vld [vmem:[#allocation2] sm:$0xff]
    %v116 = vld [vmem:[#allocation2 + $0x8] sm:$0xff]
    %v117 = vld [vmem:[#allocation2 + $0x10] sm:$0xff]
    %v118 = vld [vmem:[#allocation2 + $0x18] sm:$0xff]
    %v119 = vld [vmem:[#allocation2 + $0x20] sm:$0xff]
    %v120 = vld [vmem:[#allocation2 + $0x28] sm:$0xff]
    %v121 = vld [vmem:[#allocation2 + $0x30] sm:$0xff]
    %v122 = vld [vmem:[#allocation2 + $0x38] sm:$0xff]
    %v123 = vld [vmem:[#allocation2 + $0x40] sm:$0xff]
    %v124 = vld [vmem:[#allocation2 + $0x48] sm:$0xff]
    %v125 = vld [vmem:[#allocation2 + $0x50] sm:$0xff]
    %v126 = vld [vmem:[#allocation2 + $0x58] sm:$0xff]
    %v127 = vld [vmem:[#allocation2 + $0x60] sm:$0xff]
    %v128 = vld [vmem:[#allocation2 + $0x68] sm:$0xff]
    %v129 = vld [vmem:[#allocation2 + $0x70] sm:$0xff]
    %v130 = vld [vmem:[#allocation2 + $0x78] sm:$0xff]
    %v131 = vld [vmem:[%s3] sm:$0xf]
    %v133 = vlaneseq
    %v134 = vshrl.u32 %v133, 7
    %v135 = vsub.s32 0, %v134
    %v136 = vrot.slane %v131, %v135
    %v137 = vlaneseq
    %v138 = vshrl.u32 %v137, 7
    %v139 = vsub.s32 1, %v138
    %v140 = vrot.slane %v131, %v139
    %v141 = vlaneseq
    %v142 = vshrl.u32 %v141, 7
    %v143 = vsub.s32 2, %v142
    %v144 = vrot.slane %v131, %v143
    %v145 = vlaneseq
    %v146 = vshrl.u32 %v145, 7
    %v147 = vsub.s32 3, %v146
    %v148 = vrot.slane %v131, %v147
    %v161 = vunpack.c.l.b16 %v107
    %v162 = vunpack.c.l.b16 %v108
    %v163 = vunpack.c.l.b16 %v109
    %v164 = vunpack.c.l.b16 %v110
    %v165 = vunpack.c.l.b16 %v111
    %v166 = vunpack.c.l.b16 %v112
    %v167 = vunpack.c.l.b16 %v113
    %v168 = vunpack.c.l.b16 %v114
    %v169 = vpack.c.b16 %v162, %v161
    %v170 = vpack.c.b16 %v164, %v163
    %v171 = vpack.c.b16 %v166, %v165
    %v172 = vpack.c.b16 %v168, %v167
    %v189 = vunpack.c.l.b16 %v115
    %v190 = vunpack.c.h.b16 %v115
    %v191 = vunpack.c.l.b16 %v116
    %v192 = vunpack.c.h.b16 %v116
    %v193 = vunpack.c.l.b16 %v117
    %v194 = vunpack.c.h.b16 %v117
    %v195 = vunpack.c.l.b16 %v118
    %v196 = vunpack.c.h.b16 %v118
    %v197 = vunpack.c.l.b16 %v119
    %v198 = vunpack.c.h.b16 %v119
    %v199 = vunpack.c.l.b16 %v120
    %v200 = vunpack.c.h.b16 %v120
    %v201 = vunpack.c.l.b16 %v121
    %v202 = vunpack.c.h.b16 %v121
    %v203 = vunpack.c.l.b16 %v122
    %v204 = vunpack.c.h.b16 %v122
    %v205 = vunpack.c.l.b16 %v123
    %v206 = vunpack.c.h.b16 %v123
    %v207 = vunpack.c.l.b16 %v124
    %v208 = vunpack.c.h.b16 %v124
    %v209 = vunpack.c.l.b16 %v125
    %v210 = vunpack.c.h.b16 %v125
    %v211 = vunpack.c.l.b16 %v126
    %v212 = vunpack.c.h.b16 %v126
    %v213 = vunpack.c.l.b16 %v127
    %v214 = vunpack.c.h.b16 %v127
    %v215 = vunpack.c.l.b16 %v128
    %v216 = vunpack.c.h.b16 %v128
    %v217 = vunpack.c.l.b16 %v129
    %v218 = vunpack.c.h.b16 %v129
    %v219 = vunpack.c.l.b16 %v130
    %v220 = vunpack.c.h.b16 %v130
    %v221 = vpack.c.b16 %v193, %v189
    %v222 = vpack.c.b16 %v194, %v190
    %v223 = vpack.c.b16 %v195, %v191
    %v224 = vpack.c.b16 %v196, %v192
    %v225 = vpack.c.b16 %v201, %v197
    %v226 = vpack.c.b16 %v202, %v198
    %v227 = vpack.c.b16 %v203, %v199
    %v228 = vpack.c.b16 %v204, %v200
    %v229 = vpack.c.b16 %v209, %v205
    %v230 = vpack.c.b16 %v210, %v206
    %v231 = vpack.c.b16 %v211, %v207
    %v232 = vpack.c.b16 %v212, %v208
    %v233 = vpack.c.b16 %v217, %v213
    %v234 = vpack.c.b16 %v218, %v214
    %v235 = vpack.c.b16 %v219, %v215
    %v236 = vpack.c.b16 %v220, %v216
    %vm253 = vcmask 523264
    %v255 = vsel %vm253, %v169, 0
    %v258 = vsel %vm253, %v170, 0
    %v261 = vsel %vm253, %v171, 0
    %v264 = vsel %vm253, %v172, 0
    %266 = vmatprep.subr.bf16.mxu0 %v222
    %267 = vmatpush1.bf16.msra.mxu0 %v221
    %268 = vmatprep.subr.bf16.mxu0 %v226
    %269 = vmatpush1.bf16.msra.mxu0 %v225
    %270 = vmatprep.subr.bf16.mxu0 %v230
    %271 = vmatpush1.bf16.msra.mxu0 %v229
    %272 = vmatprep.subr.bf16.mxu0 %v234
    %273 = vmatpush1.bf16.msra.mxu0 %v233
    %274 = vmatprep.subr.bf16.mxu0 0
    %275 = vmatpush1.bf16.msra.mxu0 0
    %276 = vmatprep.subr.bf16.mxu0 0
    %277 = vmatpush1.bf16.msra.mxu0 0
    %278 = vmatprep.subr.bf16.mxu0 0
    %279 = vmatpush1.bf16.msra.mxu0 0
    %280 = vmatprep.subr.bf16.mxu0 0
    %281 = vmatpush1.bf16.msra.mxu0 0
    %282 = vmatprep.subr.bf16.mxu0 0
    %283 = vmatpush1.bf16.msra.mxu0 0
    %284 = vmatprep.subr.bf16.mxu0 0
    %285 = vmatpush1.bf16.msra.mxu0 0
    %286 = vmatprep.subr.bf16.mxu0 0
    %287 = vmatpush1.bf16.msra.mxu0 0
    %288 = vmatprep.subr.bf16.mxu0 0
    %289 = vmatpush1.bf16.msra.mxu0 0
    %290 = vmatprep.subr.bf16.mxu0 0
    %291 = vmatpush1.bf16.msra.mxu0 0
    %292 = vmatprep.subr.bf16.mxu0 0
    %293 = vmatpush1.bf16.msra.mxu0 0
    %294 = vmatprep.subr.bf16.mxu0 0
    %295 = vmatpush1.bf16.msra.mxu0 0
    %296 = vmatprep.subr.bf16.mxu0 0
    %297 = vmatpush1.bf16.msra.mxu0 0
    %298 = vmatprep.mubr.bf16.mxu0 0
    %299 = vmatmul.mubr.bf16.gmra.mrb[0].mxu0 %v255
    %v300 = vpop.f32.mrb[0].mxu0
    %v301 = vadd.f32 %v136, %v300
    %v302 = vpop.f32.mrb[0].mxu0
    %v303 = vadd.f32 %v140, %v302
    %v304 = vpop.f32.mrb[0].mxu0
    %v305 = vadd.f32 %v136, %v304
    %v306 = vpop.f32.mrb[0].mxu0
    %v307 = vadd.f32 %v140, %v306
    %308 = vmatprep.mubr.bf16.mxu0 0
    %309 = vmatmul.mubr.bf16.gmra.mrb[0].mxu0 %v258
    %v310 = vpop.f32.mrb[0].mxu0
    %v311 = vadd.f32 %v136, %v310
    %v312 = vpop.f32.mrb[0].mxu0
    %v313 = vadd.f32 %v140, %v312
    %v314 = vpop.f32.mrb[0].mxu0
    %v315 = vadd.f32 %v136, %v314
    %v316 = vpop.f32.mrb[0].mxu0
    %v317 = vadd.f32 %v140, %v316
    %318 = vmatprep.mubr.bf16.mxu0 0
    %319 = vmatmul.mubr.bf16.gmra.mrb[0].mxu0 %v261
    %v320 = vpop.f32.mrb[0].mxu0
    %v321 = vadd.f32 %v136, %v320
    %v322 = vpop.f32.mrb[0].mxu0
    %v323 = vadd.f32 %v140, %v322
    %v324 = vpop.f32.mrb[0].mxu0
    %v325 = vadd.f32 %v136, %v324
    %v326 = vpop.f32.mrb[0].mxu0
    %v327 = vadd.f32 %v140, %v326
    %328 = vmatprep.mubr.bf16.mxu0 0
    %329 = vmatmul.mubr.bf16.gmra.mrb[0].mxu0 %v264
    %v330 = vpop.f32.mrb[0].mxu0
    %v331 = vadd.f32 %v136, %v330
    %v332 = vpop.f32.mrb[0].mxu0
    %v333 = vadd.f32 %v140, %v332
    %v334 = vpop.f32.mrb[0].mxu0
    %v335 = vadd.f32 %v136, %v334
    %v336 = vpop.f32.mrb[0].mxu0
    %v337 = vadd.f32 %v140, %v336
    %338 = vdwg.mxu0
    %339 = vmatprep.subr.bf16.mxu0 %v224
    %340 = vmatpush1.bf16.msra.mxu0 %v223
    %341 = vmatprep.subr.bf16.mxu0 %v228
    %342 = vmatpush1.bf16.msra.mxu0 %v227
    %343 = vmatprep.subr.bf16.mxu0 %v232
    %344 = vmatpush1.bf16.msra.mxu0 %v231
    %345 = vmatprep.subr.bf16.mxu0 %v236
    %346 = vmatpush1.bf16.msra.mxu0 %v235
    %347 = vmatprep.subr.bf16.mxu0 0
    %348 = vmatpush1.bf16.msra.mxu0 0
    %349 = vmatprep.subr.bf16.mxu0 0
    %350 = vmatpush1.bf16.msra.mxu0 0
    %351 = vmatprep.subr.bf16.mxu0 0
    %352 = vmatpush1.bf16.msra.mxu0 0
    %353 = vmatprep.subr.bf16.mxu0 0
    %354 = vmatpush1.bf16.msra.mxu0 0
    %355 = vmatprep.subr.bf16.mxu0 0
    %356 = vmatpush1.bf16.msra.mxu0 0
    %357 = vmatprep.subr.bf16.mxu0 0
    %358 = vmatpush1.bf16.msra.mxu0 0
    %359 = vmatprep.subr.bf16.mxu0 0
    %360 = vmatpush1.bf16.msra.mxu0 0
    %361 = vmatprep.subr.bf16.mxu0 0
    %362 = vmatpush1.bf16.msra.mxu0 0
    %363 = vmatprep.subr.bf16.mxu0 0
    %364 = vmatpush1.bf16.msra.mxu0 0
    %365 = vmatprep.subr.bf16.mxu0 0
    %366 = vmatpush1.bf16.msra.mxu0 0
    %367 = vmatprep.subr.bf16.mxu0 0
    %368 = vmatpush1.bf16.msra.mxu0 0
    %369 = vmatprep.subr.bf16.mxu0 0
    %370 = vmatpush1.bf16.msra.mxu0 0
    %371 = vmatprep.mubr.bf16.mxu0 0
    %372 = vmatmul.mubr.bf16.gmra.mrb[0].mxu0 %v255
    %v373 = vpop.f32.mrb[0].mxu0
    %v374 = vadd.f32 %v144, %v373
    %v375 = vpop.f32.mrb[0].mxu0
    %v376 = vadd.f32 %v148, %v375
    %v377 = vpop.f32.mrb[0].mxu0
    %v378 = vadd.f32 %v144, %v377
    %v379 = vpop.f32.mrb[0].mxu0
    %v380 = vadd.f32 %v148, %v379
    %381 = vmatprep.mubr.bf16.mxu0 0
    %382 = vmatmul.mubr.bf16.gmra.mrb[0].mxu0 %v258
    %v383 = vpop.f32.mrb[0].mxu0
    %v384 = vadd.f32 %v144, %v383
    %v385 = vpop.f32.mrb[0].mxu0
    %v386 = vadd.f32 %v148, %v385
    %v387 = vpop.f32.mrb[0].mxu0
    %v388 = vadd.f32 %v144, %v387
    %v389 = vpop.f32.mrb[0].mxu0
    %v390 = vadd.f32 %v148, %v389
    %391 = vmatprep.mubr.bf16.mxu0 0
    %392 = vmatmul.mubr.bf16.gmra.mrb[0].mxu0 %v261
    %v393 = vpop.f32.mrb[0].mxu0
    %v394 = vadd.f32 %v144, %v393
    %v395 = vpop.f32.mrb[0].mxu0
    %v396 = vadd.f32 %v148, %v395
    %v397 = vpop.f32.mrb[0].mxu0
    %v398 = vadd.f32 %v144, %v397
    %v399 = vpop.f32.mrb[0].mxu0
    %v400 = vadd.f32 %v148, %v399
    %401 = vmatprep.mubr.bf16.mxu0 0
    %402 = vmatmul.mubr.bf16.gmra.mrb[0].mxu0 %v264
    %v403 = vpop.f32.mrb[0].mxu0
    %v404 = vadd.f32 %v144, %v403
    %v405 = vpop.f32.mrb[0].mxu0
    %v406 = vadd.f32 %v148, %v405
    %v407 = vpop.f32.mrb[0].mxu0
    %v408 = vadd.f32 %v144, %v407
    %v409 = vpop.f32.mrb[0].mxu0
    %v410 = vadd.f32 %v148, %v409
    %411 = vdwg.mxu0
    %v412 = vld [vmem:[#allocation6] sm:$0xff]
    %v413 = vld [vmem:[#allocation6 + $0x8] sm:$0xff]
    %v414 = vld [vmem:[#allocation6 + $0x10] sm:$0xff]
    %v415 = vld [vmem:[#allocation6 + $0x18] sm:$0xff]
    %v416 = vld [vmem:[#allocation6 + $0x20] sm:$0xff]
    %v417 = vld [vmem:[#allocation6 + $0x28] sm:$0xff]
    %v418 = vld [vmem:[#allocation6 + $0x30] sm:$0xff]
    %v419 = vld [vmem:[#allocation6 + $0x38] sm:$0xff]
    %v420 = vld [vmem:[#allocation6 + $0x40] sm:$0xff]
    %v421 = vld [vmem:[#allocation6 + $0x48] sm:$0xff]
    %v422 = vld [vmem:[#allocation6 + $0x50] sm:$0xff]
    %v423 = vld [vmem:[#allocation6 + $0x58] sm:$0xff]
    %v424 = vld [vmem:[#allocation6 + $0x60] sm:$0xff]
    %v425 = vld [vmem:[#allocation6 + $0x68] sm:$0xff]
    %v426 = vld [vmem:[#allocation6 + $0x70] sm:$0xff]
    %v427 = vld [vmem:[#allocation6 + $0x78] sm:$0xff]
    %v428 = vld [vmem:[%s6] sm:$0xf]
    %v430 = vlaneseq
    %v431 = vshrl.u32 %v430, 7
    %v432 = vsub.s32 0, %v431
    %v433 = vrot.slane %v428, %v432
    %v434 = vlaneseq
    %v435 = vshrl.u32 %v434, 7
    %v436 = vsub.s32 1, %v435
    %v437 = vrot.slane %v428, %v436
    %v438 = vlaneseq
    %v439 = vshrl.u32 %v438, 7
    %v440 = vsub.s32 2, %v439
    %v441 = vrot.slane %v428, %v440
    %v442 = vlaneseq
    %v443 = vshrl.u32 %v442, 7
    %v444 = vsub.s32 3, %v443
    %v445 = vrot.slane %v428, %v444
    %v466 = vunpack.c.l.b16 %v412
    %v467 = vunpack.c.h.b16 %v412
    %v468 = vunpack.c.l.b16 %v413
    %v469 = vunpack.c.h.b16 %v413
    %v470 = vunpack.c.l.b16 %v414
    %v471 = vunpack.c.h.b16 %v414
    %v472 = vunpack.c.l.b16 %v415
    %v473 = vunpack.c.h.b16 %v415
    %v474 = vunpack.c.l.b16 %v416
    %v475 = vunpack.c.h.b16 %v416
    %v476 = vunpack.c.l.b16 %v417
    %v477 = vunpack.c.h.b16 %v417
    %v478 = vunpack.c.l.b16 %v418
    %v479 = vunpack.c.h.b16 %v418
    %v480 = vunpack.c.l.b16 %v419
    %v481 = vunpack.c.h.b16 %v419
    %v482 = vunpack.c.l.b16 %v420
    %v483 = vunpack.c.h.b16 %v420
    %v484 = vunpack.c.l.b16 %v421
    %v485 = vunpack.c.h.b16 %v421
    %v486 = vunpack.c.l.b16 %v422
    %v487 = vunpack.c.h.b16 %v422
    %v488 = vunpack.c.l.b16 %v423
    %v489 = vunpack.c.h.b16 %v423
    %v490 = vunpack.c.l.b16 %v424
    %v491 = vunpack.c.h.b16 %v424
    %v492 = vunpack.c.l.b16 %v425
    %v493 = vunpack.c.h.b16 %v425
    %v494 = vunpack.c.l.b16 %v426
    %v495 = vunpack.c.h.b16 %v426
    %v496 = vunpack.c.l.b16 %v427
    %v497 = vunpack.c.h.b16 %v427
    %v498 = vpack.c.b16 %v470, %v466
    %v499 = vpack.c.b16 %v471, %v467
    %v500 = vpack.c.b16 %v472, %v468
    %v501 = vpack.c.b16 %v473, %v469
    %v502 = vpack.c.b16 %v478, %v474
    %v503 = vpack.c.b16 %v479, %v475
    %v504 = vpack.c.b16 %v480, %v476
    %v505 = vpack.c.b16 %v481, %v477
    %v506 = vpack.c.b16 %v486, %v482
    %v507 = vpack.c.b16 %v487, %v483
    %v508 = vpack.c.b16 %v488, %v484
    %v509 = vpack.c.b16 %v489, %v485
    %v510 = vpack.c.b16 %v494, %v490
    %v511 = vpack.c.b16 %v495, %v491
    %v512 = vpack.c.b16 %v496, %v492
    %v513 = vpack.c.b16 %v497, %v493
    %v531 = vsel %vm253, %v114, 0
    %533 = vmatprep.subr.bf16.mxu0 %v499
    %534 = vmatpush1.bf16.msra.mxu0 %v498
    %535 = vmatprep.subr.bf16.mxu0 %v503
    %536 = vmatpush1.bf16.msra.mxu0 %v502
    %537 = vmatprep.subr.bf16.mxu0 %v507
    %538 = vmatpush1.bf16.msra.mxu0 %v506
    %539 = vmatprep.subr.bf16.mxu0 %v511
    %540 = vmatpush1.bf16.msra.mxu0 %v510
    %541 = vmatprep.subr.bf16.mxu0 0
    %542 = vmatpush1.bf16.msra.mxu0 0
    %543 = vmatprep.subr.bf16.mxu0 0
    %544 = vmatpush1.bf16.msra.mxu0 0
    %545 = vmatprep.subr.bf16.mxu0 0
    %546 = vmatpush1.bf16.msra.mxu0 0
    %547 = vmatprep.subr.bf16.mxu0 0
    %548 = vmatpush1.bf16.msra.mxu0 0
    %549 = vmatprep.subr.bf16.mxu0 0
    %550 = vmatpush1.bf16.msra.mxu0 0
    %551 = vmatprep.subr.bf16.mxu0 0
    %552 = vmatpush1.bf16.msra.mxu0 0
    %553 = vmatprep.subr.bf16.mxu0 0
    %554 = vmatpush1.bf16.msra.mxu0 0
    %555 = vmatprep.subr.bf16.mxu0 0
    %556 = vmatpush1.bf16.msra.mxu0 0
    %557 = vmatprep.subr.bf16.mxu0 0
    %558 = vmatpush1.bf16.msra.mxu0 0
    %559 = vmatprep.subr.bf16.mxu0 0
    %560 = vmatpush1.bf16.msra.mxu0 0
    %561 = vmatprep.subr.bf16.mxu0 0
    %562 = vmatpush1.bf16.msra.mxu0 0
    %563 = vmatprep.subr.bf16.mxu0 0
    %564 = vmatpush1.bf16.msra.mxu0 0
    %565 = vmatprep.mubr.bf16.mxu0 0
    %566 = vmatmul.mubr.bf16.gmra.mrb[0].mxu0 %v531
    %v567 = vpop.f32.mrb[0].mxu0
    %v568 = vadd.f32 %v433, %v567
    %v569 = vpop.f32.mrb[0].mxu0
    %v570 = vadd.f32 %v437, %v569
    %v571 = vpop.f32.mrb[0].mxu0
    %v572 = vpop.f32.mrb[0].mxu0
    %573 = vdwg.mxu0
    %574 = vmatprep.subr.bf16.mxu0 %v501
    %575 = vmatpush1.bf16.msra.mxu0 %v500
    %576 = vmatprep.subr.bf16.mxu0 %v505
    %577 = vmatpush1.bf16.msra.mxu0 %v504
    %578 = vmatprep.subr.bf16.mxu0 %v509
    %579 = vmatpush1.bf16.msra.mxu0 %v508
    %580 = vmatprep.subr.bf16.mxu0 %v513
    %581 = vmatpush1.bf16.msra.mxu0 %v512
    %582 = vmatprep.subr.bf16.mxu0 0
    %583 = vmatpush1.bf16.msra.mxu0 0
    %584 = vmatprep.subr.bf16.mxu0 0
    %585 = vmatpush1.bf16.msra.mxu0 0
    %586 = vmatprep.subr.bf16.mxu0 0
    %587 = vmatpush1.bf16.msra.mxu0 0
    %588 = vmatprep.subr.bf16.mxu0 0
    %589 = vmatpush1.bf16.msra.mxu0 0
    %590 = vmatprep.subr.bf16.mxu0 0
    %591 = vmatpush1.bf16.msra.mxu0 0
    %592 = vmatprep.subr.bf16.mxu0 0
    %593 = vmatpush1.bf16.msra.mxu0 0
    %594 = vmatprep.subr.bf16.mxu0 0
    %595 = vmatpush1.bf16.msra.mxu0 0
    %596 = vmatprep.subr.bf16.mxu0 0
    %597 = vmatpush1.bf16.msra.mxu0 0
    %598 = vmatprep.subr.bf16.mxu0 0
    %599 = vmatpush1.bf16.msra.mxu0 0
    %600 = vmatprep.subr.bf16.mxu0 0
    %601 = vmatpush1.bf16.msra.mxu0 0
    %602 = vmatprep.subr.bf16.mxu0 0
    %603 = vmatpush1.bf16.msra.mxu0 0
    %604 = vmatprep.subr.bf16.mxu0 0
    %605 = vmatpush1.bf16.msra.mxu0 0
    %606 = vmatprep.mubr.bf16.mxu0 0
    %607 = vmatmul.mubr.bf16.gmra.mrb[0].mxu0 %v531
    %v608 = vpop.f32.mrb[0].mxu0
    %v609 = vadd.f32 %v441, %v608
    %v610 = vpop.f32.mrb[0].mxu0
    %v611 = vadd.f32 %v445, %v610
    %v612 = vpop.f32.mrb[0].mxu0
    %v613 = vpop.f32.mrb[0].mxu0
    %614 = vdwg.mxu0
    %v615 = vld [vmem:[#allocation4] sm:$0xff]
    %v616 = vld [vmem:[#allocation4 + $0x8] sm:$0xff]
    %v617 = vld [vmem:[#allocation4 + $0x10] sm:$0xff]
    %v618 = vld [vmem:[#allocation4 + $0x18] sm:$0xff]
    %v619 = vld [vmem:[#allocation4 + $0x20] sm:$0xff]
    %v620 = vld [vmem:[#allocation4 + $0x28] sm:$0xff]
    %v621 = vld [vmem:[#allocation4 + $0x30] sm:$0xff]
    %v622 = vld [vmem:[#allocation4 + $0x38] sm:$0xff]
    %v623 = vld [vmem:[#allocation4 + $0x40] sm:$0xff]
    %v624 = vld [vmem:[#allocation4 + $0x48] sm:$0xff]
    %v625 = vld [vmem:[#allocation4 + $0x50] sm:$0xff]
    %v626 = vld [vmem:[#allocation4 + $0x58] sm:$0xff]
    %v627 = vld [vmem:[#allocation4 + $0x60] sm:$0xff]
    %v628 = vld [vmem:[#allocation4 + $0x68] sm:$0xff]
    %v629 = vld [vmem:[#allocation4 + $0x70] sm:$0xff]
    %v630 = vld [vmem:[#allocation4 + $0x78] sm:$0xff]
    %v631 = vld [vmem:[#allocation4 + $0x80] sm:$0xff]
    %v632 = vld [vmem:[#allocation4 + $0x88] sm:$0xff]
    %v633 = vld [vmem:[#allocation4 + $0x90] sm:$0xff]
    %v634 = vld [vmem:[#allocation4 + $0x98] sm:$0xff]
    %v635 = vld [vmem:[#allocation4 + $0xa0] sm:$0xff]
    %v636 = vld [vmem:[#allocation4 + $0xa8] sm:$0xff]
    %v637 = vld [vmem:[#allocation4 + $0xb0] sm:$0xff]
    %v638 = vld [vmem:[#allocation4 + $0xb8] sm:$0xff]
    %v639 = vld [vmem:[#allocation4 + $0xc0] sm:$0xff]
    %v640 = vld [vmem:[#allocation4 + $0xc8] sm:$0xff]
    %v641 = vld [vmem:[#allocation4 + $0xd0] sm:$0xff]
    %v642 = vld [vmem:[#allocation4 + $0xd8] sm:$0xff]
    %v643 = vld [vmem:[#allocation4 + $0xe0] sm:$0xff]
    %v644 = vld [vmem:[#allocation4 + $0xe8] sm:$0xff]
    %v645 = vld [vmem:[#allocation4 + $0xf0] sm:$0xff]
    %v646 = vld [vmem:[#allocation4 + $0xf8] sm:$0xff]
    %v647 = vld [vmem:[#allocation7] sm:$0xff]
    %v648 = vld [vmem:[#allocation7 + $0x8] sm:$0xff]
    %v649 = vld [vmem:[#allocation7 + $0x10] sm:$0xff]
    %v650 = vld [vmem:[#allocation7 + $0x18] sm:$0xff]
    %v651 = vld [vmem:[#allocation7 + $0x20] sm:$0xff]
    %v652 = vld [vmem:[#allocation7 + $0x28] sm:$0xff]
    %v653 = vld [vmem:[#allocation7 + $0x30] sm:$0xff]
    %v654 = vld [vmem:[#allocation7 + $0x38] sm:$0xff]
    %v655 = vld [vmem:[#allocation7 + $0x40] sm:$0xff]
    %v656 = vld [vmem:[#allocation7 + $0x48] sm:$0xff]
    %v657 = vld [vmem:[#allocation7 + $0x50] sm:$0xff]
    %v658 = vld [vmem:[#allocation7 + $0x58] sm:$0xff]
    %v659 = vld [vmem:[#allocation7 + $0x60] sm:$0xff]
    %v660 = vld [vmem:[#allocation7 + $0x68] sm:$0xff]
    %v661 = vld [vmem:[#allocation7 + $0x70] sm:$0xff]
    %v662 = vld [vmem:[#allocation7 + $0x78] sm:$0xff]
    %v663 = vld [vmem:[#allocation7 + $0x80] sm:$0xff]
    %v664 = vld [vmem:[#allocation7 + $0x88] sm:$0xff]
    %v665 = vld [vmem:[#allocation7 + $0x90] sm:$0xff]
    %v666 = vld [vmem:[#allocation7 + $0x98] sm:$0xff]
    %v667 = vld [vmem:[#allocation7 + $0xa0] sm:$0xff]
    %v668 = vld [vmem:[#allocation7 + $0xa8] sm:$0xff]
    %v669 = vld [vmem:[#allocation7 + $0xb0] sm:$0xff]
    %v670 = vld [vmem:[#allocation7 + $0xb8] sm:$0xff]
    %v671 = vld [vmem:[#allocation7 + $0xc0] sm:$0xff]
    %v672 = vld [vmem:[#allocation7 + $0xc8] sm:$0xff]
    %v673 = vld [vmem:[#allocation7 + $0xd0] sm:$0xff]
    %v674 = vld [vmem:[#allocation7 + $0xd8] sm:$0xff]
    %v675 = vld [vmem:[#allocation7 + $0xe0] sm:$0xff]
    %v676 = vld [vmem:[#allocation7 + $0xe8] sm:$0xff]
    %v677 = vld [vmem:[#allocation7 + $0xf0] sm:$0xff]
    %v678 = vld [vmem:[#allocation7 + $0xf8] sm:$0xff]
    %v711 = vunpack.c.l.b16 %v615
    %v712 = vunpack.c.h.b16 %v615
    %v713 = vunpack.c.l.b16 %v616
    %v714 = vunpack.c.h.b16 %v616
    %v715 = vunpack.c.l.b16 %v617
    %v716 = vunpack.c.h.b16 %v617
    %v717 = vunpack.c.l.b16 %v618
    %v718 = vunpack.c.h.b16 %v618
    %v719 = vunpack.c.l.b16 %v619
    %v720 = vunpack.c.h.b16 %v619
    %v721 = vunpack.c.l.b16 %v620
    %v722 = vunpack.c.h.b16 %v620
    %v723 = vunpack.c.l.b16 %v621
    %v724 = vunpack.c.h.b16 %v621
    %v725 = vunpack.c.l.b16 %v622
    %v726 = vunpack.c.h.b16 %v622
    %v727 = vunpack.c.l.b16 %v623
    %v728 = vunpack.c.h.b16 %v623
    %v729 = vunpack.c.l.b16 %v624
    %v730 = vunpack.c.h.b16 %v624
    %v731 = vunpack.c.l.b16 %v625
    %v732 = vunpack.c.h.b16 %v625
    %v733 = vunpack.c.l.b16 %v626
    %v734 = vunpack.c.h.b16 %v626
    %v735 = vunpack.c.l.b16 %v627
    %v736 = vunpack.c.h.b16 %v627
    %v737 = vunpack.c.l.b16 %v628
    %v738 = vunpack.c.h.b16 %v628
    %v739 = vunpack.c.l.b16 %v629
    %v740 = vunpack.c.h.b16 %v629
    %v741 = vunpack.c.l.b16 %v630
    %v742 = vunpack.c.h.b16 %v630
    %v743 = vunpack.c.l.b16 %v631
    %v744 = vunpack.c.h.b16 %v631
    %v745 = vunpack.c.l.b16 %v632
    %v746 = vunpack.c.h.b16 %v632
    %v747 = vunpack.c.l.b16 %v633
    %v748 = vunpack.c.h.b16 %v633
    %v749 = vunpack.c.l.b16 %v634
    %v750 = vunpack.c.h.b16 %v634
    %v751 = vunpack.c.l.b16 %v635
    %v752 = vunpack.c.h.b16 %v635
    %v753 = vunpack.c.l.b16 %v636
    %v754 = vunpack.c.h.b16 %v636
    %v755 = vunpack.c.l.b16 %v637
    %v756 = vunpack.c.h.b16 %v637
    %v757 = vunpack.c.l.b16 %v638
    %v758 = vunpack.c.h.b16 %v638
    %v759 = vunpack.c.l.b16 %v639
    %v760 = vunpack.c.h.b16 %v639
    %v761 = vunpack.c.l.b16 %v640
    %v762 = vunpack.c.h.b16 %v640
    %v763 = vunpack.c.l.b16 %v641
    %v764 = vunpack.c.h.b16 %v641
    %v765 = vunpack.c.l.b16 %v642
    %v766 = vunpack.c.h.b16 %v642
    %v767 = vunpack.c.l.b16 %v643
    %v768 = vunpack.c.h.b16 %v643
    %v769 = vunpack.c.l.b16 %v644
    %v770 = vunpack.c.h.b16 %v644
    %v771 = vunpack.c.l.b16 %v645
    %v772 = vunpack.c.h.b16 %v645
    %v773 = vunpack.c.l.b16 %v646
    %v774 = vunpack.c.h.b16 %v646
    %v775 = vpack.c.b16 %v715, %v711
    %v776 = vpack.c.b16 %v716, %v712
    %v777 = vpack.c.b16 %v717, %v713
    %v778 = vpack.c.b16 %v718, %v714
    %v779 = vpack.c.b16 %v723, %v719
    %v780 = vpack.c.b16 %v724, %v720
    %v781 = vpack.c.b16 %v725, %v721
    %v782 = vpack.c.b16 %v726, %v722
    %v783 = vpack.c.b16 %v731, %v727
    %v784 = vpack.c.b16 %v732, %v728
    %v785 = vpack.c.b16 %v733, %v729
    %v786 = vpack.c.b16 %v734, %v730
    %v787 = vpack.c.b16 %v739, %v735
    %v788 = vpack.c.b16 %v740, %v736
    %v789 = vpack.c.b16 %v741, %v737
    %v790 = vpack.c.b16 %v742, %v738
    %v791 = vpack.c.b16 %v747, %v743
    %v792 = vpack.c.b16 %v748, %v744
    %v793 = vpack.c.b16 %v749, %v745
    %v794 = vpack.c.b16 %v750, %v746
    %v795 = vpack.c.b16 %v755, %v751
    %v796 = vpack.c.b16 %v756, %v752
    %v797 = vpack.c.b16 %v757, %v753
    %v798 = vpack.c.b16 %v758, %v754
    %v799 = vpack.c.b16 %v763, %v759
    %v800 = vpack.c.b16 %v764, %v760
    %v801 = vpack.c.b16 %v765, %v761
    %v802 = vpack.c.b16 %v766, %v762
    %v803 = vpack.c.b16 %v771, %v767
    %v804 = vpack.c.b16 %v772, %v768
    %v805 = vpack.c.b16 %v773, %v769
    %v806 = vpack.c.b16 %v774, %v770
    %839 = vmatprep.subr.bf16.mxu0 %v776
    %840 = vmatpush1.bf16.msra.mxu0 %v775
    %841 = vmatprep.subr.bf16.mxu0 %v780
    %842 = vmatpush1.bf16.msra.mxu0 %v779
    %843 = vmatprep.subr.bf16.mxu0 %v784
    %844 = vmatpush1.bf16.msra.mxu0 %v783
    %845 = vmatprep.subr.bf16.mxu0 %v788
    %846 = vmatpush1.bf16.msra.mxu0 %v787
    %847 = vmatprep.subr.bf16.mxu0 %v792
    %848 = vmatpush1.bf16.msra.mxu0 %v791
    %849 = vmatprep.subr.bf16.mxu0 %v796
    %850 = vmatpush1.bf16.msra.mxu0 %v795
    %851 = vmatprep.subr.bf16.mxu0 %v800
    %852 = vmatpush1.bf16.msra.mxu0 %v799
    %853 = vmatprep.subr.bf16.mxu0 %v804
    %854 = vmatpush1.bf16.msra.mxu0 %v803
    %855 = vmatprep.subr.bf16.mxu0 0
    %856 = vmatpush1.bf16.msra.mxu0 0
    %857 = vmatprep.subr.bf16.mxu0 0
    %858 = vmatpush1.bf16.msra.mxu0 0
    %859 = vmatprep.subr.bf16.mxu0 0
    %860 = vmatpush1.bf16.msra.mxu0 0
    %861 = vmatprep.subr.bf16.mxu0 0
    %862 = vmatpush1.bf16.msra.mxu0 0
    %863 = vmatprep.subr.bf16.mxu0 0
    %864 = vmatpush1.bf16.msra.mxu0 0
    %865 = vmatprep.subr.bf16.mxu0 0
    %866 = vmatpush1.bf16.msra.mxu0 0
    %867 = vmatprep.subr.bf16.mxu0 0
    %868 = vmatpush1.bf16.msra.mxu0 0
    %869 = vmatprep.subr.bf16.mxu0 0
    %870 = vmatpush1.bf16.msra.mxu0 0
    %871 = vmatprep.mubr.bf16.mxu0 0
    %872 = vmatmul.mubr.bf16.gmra.mrb[0].mxu0 0
    %v873 = vpop.f32.mrb[0].mxu0
    %v874 = vadd.f32 0.0, %v873
    %v875 = vpop.f32.mrb[0].mxu0
    %v876 = vadd.f32 0.0, %v875
    %v877 = vpop.f32.mrb[0].mxu0
    %v878 = vpop.f32.mrb[0].mxu0
    %879 = vdwg.mxu0
    %880 = vmatprep.subr.bf16.mxu0 %v778
    %881 = vmatpush1.bf16.msra.mxu0 %v777
    %882 = vmatprep.subr.bf16.mxu0 %v782
    %883 = vmatpush1.bf16.msra.mxu0 %v781
    %884 = vmatprep.subr.bf16.mxu0 %v786
    %885 = vmatpush1.bf16.msra.mxu0 %v785
    %886 = vmatprep.subr.bf16.mxu0 %v790
    %887 = vmatpush1.bf16.msra.mxu0 %v789
    %888 = vmatprep.subr.bf16.mxu0 %v794
    %889 = vmatpush1.bf16.msra.mxu0 %v793
    %890 = vmatprep.subr.bf16.mxu0 %v798
    %891 = vmatpush1.bf16.msra.mxu0 %v797
    %892 = vmatprep.subr.bf16.mxu0 %v802
    %893 = vmatpush1.bf16.msra.mxu0 %v801
    %894 = vmatprep.subr.bf16.mxu0 %v806
    %895 = vmatpush1.bf16.msra.mxu0 %v805
    %896 = vmatprep.subr.bf16.mxu0 0
    %897 = vmatpush1.bf16.msra.mxu0 0
    %898 = vmatprep.subr.bf16.mxu0 0
    %899 = vmatpush1.bf16.msra.mxu0 0
    %900 = vmatprep.subr.bf16.mxu0 0
    %901 = vmatpush1.bf16.msra.mxu0 0
    %902 = vmatprep.subr.bf16.mxu0 0
    %903 = vmatpush1.bf16.msra.mxu0 0
    %904 = vmatprep.subr.bf16.mxu0 0
    %905 = vmatpush1.bf16.msra.mxu0 0
    %906 = vmatprep.subr.bf16.mxu0 0
    %907 = vmatpush1.bf16.msra.mxu0 0
    %908 = vmatprep.subr.bf16.mxu0 0
    %909 = vmatpush1.bf16.msra.mxu0 0
    %910 = vmatprep.subr.bf16.mxu0 0
    %911 = vmatpush1.bf16.msra.mxu0 0
    %912 = vmatprep.mubr.bf16.mxu0 0
    %913 = vmatmul.mubr.bf16.gmra.mrb[0].mxu0 0
    %v914 = vpop.f32.mrb[0].mxu0
    %v915 = vadd.f32 0.0, %v914
    %v916 = vpop.f32.mrb[0].mxu0
    %v917 = vadd.f32 0.0, %v916
    %v918 = vpop.f32.mrb[0].mxu0
    %v919 = vpop.f32.mrb[0].mxu0
    %920 = vdwg.mxu0
    %v921 = vadd.f32 %v301, %v874
    %v922 = vadd.f32 %v303, %v876
    %v923 = vadd.f32 %v374, %v915
    %v924 = vadd.f32 %v376, %v917
    %v925 = vxor.u32 %v921, 2147483648
    %v926 = vxor.u32 %v922, 2147483648
    %v927 = vxor.u32 %v923, 2147483648
    %v928 = vmul.f32 %v925, 1.442695
    %v929 = vpow.pop %v928
    %v930 = vmul.f32 %v926, 1.442695
    %v931 = vpow.pop %v930
    %v932 = vmul.f32 %v927, 1.442695
    %v933 = vpow.pop %v932
    %v934 = vadd.f32 %v929, 1.0
    %v935 = vadd.f32 %v931, 1.0
    %v936 = vadd.f32 %v933, 1.0
    %v937 = vrcp.pop %v934
    %v938 = vmul.f32 1.0, %v937
    %v939 = vrcp.pop %v935
    %v940 = vmul.f32 1.0, %v939
    %v941 = vrcp.pop %v936
    %v942 = vmul.f32 1.0, %v941
    %v943 = vtanh.pop %v924
    %v944 = vmul.f32 %v940, 0.0
    %v945 = vmul.f32 %v938, %v943
    %v946 = vadd.f32 %v944, %v945
    %v947 = vtanh.pop %v946
    %v948 = vmul.f32 %v942, %v947
    %v949 = vpack.c.bf16 %v948, %v948
    %950 = vmatprep.subr.bf16.mxu0 %v776
    %951 = vmatpush1.bf16.msra.mxu0 %v775
    %952 = vmatprep.subr.bf16.mxu0 %v780
    %953 = vmatpush1.bf16.msra.mxu0 %v779
    %954 = vmatprep.subr.bf16.mxu0 %v784
    %955 = vmatpush1.bf16.msra.mxu0 %v783
    %956 = vmatprep.subr.bf16.mxu0 %v788
    %957 = vmatpush1.bf16.msra.mxu0 %v787
    %958 = vmatprep.subr.bf16.mxu0 %v792
    %959 = vmatpush1.bf16.msra.mxu0 %v791
    %960 = vmatprep.subr.bf16.mxu0 %v796
    %961 = vmatpush1.bf16.msra.mxu0 %v795
    %962 = vmatprep.subr.bf16.mxu0 %v800
    %963 = vmatpush1.bf16.msra.mxu0 %v799
    %964 = vmatprep.subr.bf16.mxu0 %v804
    %965 = vmatpush1.bf16.msra.mxu0 %v803
    %966 = vmatprep.subr.bf16.mxu0 0
    %967 = vmatpush1.bf16.msra.mxu0 0
    %968 = vmatprep.subr.bf16.mxu0 0
    %969 = vmatpush1.bf16.msra.mxu0 0
    %970 = vmatprep.subr.bf16.mxu0 0
    %971 = vmatpush1.bf16.msra.mxu0 0
    %972 = vmatprep.subr.bf16.mxu0 0
    %973 = vmatpush1.bf16.msra.mxu0 0
    %974 = vmatprep.subr.bf16.mxu0 0
    %975 = vmatpush1.bf16.msra.mxu0 0
    %976 = vmatprep.subr.bf16.mxu0 0
    %977 = vmatpush1.bf16.msra.mxu0 0
    %978 = vmatprep.subr.bf16.mxu0 0
    %979 = vmatpush1.bf16.msra.mxu0 0
    %980 = vmatprep.subr.bf16.mxu0 0
    %981 = vmatpush1.bf16.msra.mxu0 0
    %982 = vmatprep.mubr.bf16.mxu0 0
    %983 = vmatmul.mubr.bf16.gmra.mrb[0].mxu0 %v949
    %v984 = vpop.f32.mrb[0].mxu0
    %v985 = vadd.f32 0.0, %v984
    %v986 = vpop.f32.mrb[0].mxu0
    %v987 = vadd.f32 0.0, %v986
    %v988 = vpop.f32.mrb[0].mxu0
    %v989 = vpop.f32.mrb[0].mxu0
    %990 = vdwg.mxu0
    %991 = vmatprep.subr.bf16.mxu0 %v778
    %992 = vmatpush1.bf16.msra.mxu0 %v777
    %993 = vmatprep.subr.bf16.mxu0 %v782
    %994 = vmatpush1.bf16.msra.mxu0 %v781
    %995 = vmatprep.subr.bf16.mxu0 %v786
    %996 = vmatpush1.bf16.msra.mxu0 %v785
    %997 = vmatprep.subr.bf16.mxu0 %v790
    %998 = vmatpush1.bf16.msra.mxu0 %v789
    %999 = vmatprep.subr.bf16.mxu0 %v794
    %1000 = vmatpush1.bf16.msra.mxu0 %v793
    %1001 = vmatprep.subr.bf16.mxu0 %v798
    %1002 = vmatpush1.bf16.msra.mxu0 %v797
    %1003 = vmatprep.subr.bf16.mxu0 %v802
    %1004 = vmatpush1.bf16.msra.mxu0 %v801
    %1005 = vmatprep.subr.bf16.mxu0 %v806
    %1006 = vmatpush1.bf16.msra.mxu0 %v805
    %1007 = vmatprep.subr.bf16.mxu0 0
    %1008 = vmatpush1.bf16.msra.mxu0 0
    %1009 = vmatprep.subr.bf16.mxu0 0
    %1010 = vmatpush1.bf16.msra.mxu0 0
    %1011 = vmatprep.subr.bf16.mxu0 0
    %1012 = vmatpush1.bf16.msra.mxu0 0
    %1013 = vmatprep.subr.bf16.mxu0 0
    %1014 = vmatpush1.bf16.msra.mxu0 0
    %1015 = vmatprep.subr.bf16.mxu0 0
    %1016 = vmatpush1.bf16.msra.mxu0 0
    %1017 = vmatprep.subr.bf16.mxu0 0
    %1018 = vmatpush1.bf16.msra.mxu0 0
    %1019 = vmatprep.subr.bf16.mxu0 0
    %1020 = vmatpush1.bf16.msra.mxu0 0
    %1021 = vmatprep.subr.bf16.mxu0 0
    %1022 = vmatpush1.bf16.msra.mxu0 0
    %1023 = vmatprep.mubr.bf16.mxu0 0
    %1024 = vmatmul.mubr.bf16.gmra.mrb[0].mxu0 %v949
    %v1025 = vpop.f32.mrb[0].mxu0
    %v1026 = vadd.f32 0.0, %v1025
    %v1027 = vpop.f32.mrb[0].mxu0
    %v1028 = vadd.f32 0.0, %v1027
    %v1029 = vpop.f32.mrb[0].mxu0
    %v1030 = vpop.f32.mrb[0].mxu0
    %1031 = vdwg.mxu0
    %v1032 = vadd.f32 %v305, %v985
    %v1033 = vadd.f32 %v307, %v987
    %v1034 = vadd.f32 %v378, %v1026
    %v1035 = vadd.f32 %v380, %v1028
    %v1036 = vxor.u32 %v1032, 2147483648
    %v1037 = vxor.u32 %v1033, 2147483648
    %v1038 = vxor.u32 %v1034, 2147483648
    %v1039 = vmul.f32 %v1036, 1.442695
    %v1040 = vpow.pop %v1039
    %v1041 = vmul.f32 %v1037, 1.442695
    %v1042 = vpow.pop %v1041
    %v1043 = vmul.f32 %v1038, 1.442695
    %v1044 = vpow.pop %v1043
    %v1045 = vadd.f32 %v1040, 1.0
    %v1046 = vadd.f32 %v1042, 1.0
    %v1047 = vadd.f32 %v1044, 1.0
    %v1048 = vrcp.pop %v1045
    %v1049 = vmul.f32 1.0, %v1048
    %v1050 = vrcp.pop %v1046
    %v1051 = vmul.f32 1.0, %v1050
    %v1052 = vrcp.pop %v1047
    %v1053 = vmul.f32 1.0, %v1052
    %v1054 = vtanh.pop %v1035
    %v1055 = vmul.f32 %v1051, %v946
    %v1056 = vmul.f32 %v1049, %v1054
    %v1057 = vadd.f32 %v1055, %v1056
    %v1058 = vtanh.pop %v1057
    %v1059 = vmul.f32 %v1053, %v1058
    %v1060 = vpack.c.bf16 %v1059, %v1059
    %1061 = vmatprep.subr.bf16.mxu0 %v776
    %1062 = vmatpush1.bf16.msra.mxu0 %v775
    %1063 = vmatprep.subr.bf16.mxu0 %v780
    %1064 = vmatpush1.bf16.msra.mxu0 %v779
    %1065 = vmatprep.subr.bf16.mxu0 %v784
    %1066 = vmatpush1.bf16.msra.mxu0 %v783
    %1067 = vmatprep.subr.bf16.mxu0 %v788
    %1068 = vmatpush1.bf16.msra.mxu0 %v787
    %1069 = vmatprep.subr.bf16.mxu0 %v792
    %1070 = vmatpush1.bf16.msra.mxu0 %v791
    %1071 = vmatprep.subr.bf16.mxu0 %v796
    %1072 = vmatpush1.bf16.msra.mxu0 %v795
    %1073 = vmatprep.subr.bf16.mxu0 %v800
    %1074 = vmatpush1.bf16.msra.mxu0 %v799
    %1075 = vmatprep.subr.bf16.mxu0 %v804
    %1076 = vmatpush1.bf16.msra.mxu0 %v803
    %1077 = vmatprep.subr.bf16.mxu0 0
    %1078 = vmatpush1.bf16.msra.mxu0 0
    %1079 = vmatprep.subr.bf16.mxu0 0
    %1080 = vmatpush1.bf16.msra.mxu0 0
    %1081 = vmatprep.subr.bf16.mxu0 0
    %1082 = vmatpush1.bf16.msra.mxu0 0
    %1083 = vmatprep.subr.bf16.mxu0 0
    %1084 = vmatpush1.bf16.msra.mxu0 0
    %1085 = vmatprep.subr.bf16.mxu0 0
    %1086 = vmatpush1.bf16.msra.mxu0 0
    %1087 = vmatprep.subr.bf16.mxu0 0
    %1088 = vmatpush1.bf16.msra.mxu0 0
    %1089 = vmatprep.subr.bf16.mxu0 0
    %1090 = vmatpush1.bf16.msra.mxu0 0
    %1091 = vmatprep.subr.bf16.mxu0 0
    %1092 = vmatpush1.bf16.msra.mxu0 0
    %1093 = vmatprep.mubr.bf16.mxu0 0
    %1094 = vmatmul.mubr.bf16.gmra.mrb[0].mxu0 %v1060
    %v1095 = vpop.f32.mrb[0].mxu0
    %v1096 = vadd.f32 0.0, %v1095
    %v1097 = vpop.f32.mrb[0].mxu0
    %v1098 = vadd.f32 0.0, %v1097
    %v1099 = vpop.f32.mrb[0].mxu0
    %v1100 = vpop.f32.mrb[0].mxu0
    %1101 = vdwg.mxu0
    %1102 = vmatprep.subr.bf16.mxu0 %v778
    %1103 = vmatpush1.bf16.msra.mxu0 %v777
    %1104 = vmatprep.subr.bf16.mxu0 %v782
    %1105 = vmatpush1.bf16.msra.mxu0 %v781
    %1106 = vmatprep.subr.bf16.mxu0 %v786
    %1107 = vmatpush1.bf16.msra.mxu0 %v785
    %1108 = vmatprep.subr.bf16.mxu0 %v790
    %1109 = vmatpush1.bf16.msra.mxu0 %v789
    %1110 = vmatprep.subr.bf16.mxu0 %v794
    %1111 = vmatpush1.bf16.msra.mxu0 %v793
    %1112 = vmatprep.subr.bf16.mxu0 %v798
    %1113 = vmatpush1.bf16.msra.mxu0 %v797
    %1114 = vmatprep.subr.bf16.mxu0 %v802
    %1115 = vmatpush1.bf16.msra.mxu0 %v801
    %1116 = vmatprep.subr.bf16.mxu0 %v806
    %1117 = vmatpush1.bf16.msra.mxu0 %v805
    %1118 = vmatprep.subr.bf16.mxu0 0
    %1119 = vmatpush1.bf16.msra.mxu0 0
    %1120 = vmatprep.subr.bf16.mxu0 0
    %1121 = vmatpush1.bf16.msra.mxu0 0
    %1122 = vmatprep.subr.bf16.mxu0 0
    %1123 = vmatpush1.bf16.msra.mxu0 0
    %1124 = vmatprep.subr.bf16.mxu0 0
    %1125 = vmatpush1.bf16.msra.mxu0 0
    %1126 = vmatprep.subr.bf16.mxu0 0
    %1127 = vmatpush1.bf16.msra.mxu0 0
    %1128 = vmatprep.subr.bf16.mxu0 0
    %1129 = vmatpush1.bf16.msra.mxu0 0
    %1130 = vmatprep.subr.bf16.mxu0 0
    %1131 = vmatpush1.bf16.msra.mxu0 0
    %1132 = vmatprep.subr.bf16.mxu0 0
    %1133 = vmatpush1.bf16.msra.mxu0 0
    %1134 = vmatprep.mubr.bf16.mxu0 0
    %1135 = vmatmul.mubr.bf16.gmra.mrb[0].mxu0 %v1060
    %v1136 = vpop.f32.mrb[0].mxu0
    %v1137 = vadd.f32 0.0, %v1136
    %v1138 = vpop.f32.mrb[0].mxu0
    %v1139 = vadd.f32 0.0, %v1138
    %v1140 = vpop.f32.mrb[0].mxu0
    %v1141 = vpop.f32.mrb[0].mxu0
    %1142 = vdwg.mxu0
    %v1143 = vadd.f32 %v311, %v1096
    %v1144 = vadd.f32 %v313, %v1098
    %v1145 = vadd.f32 %v384, %v1137
    %v1146 = vadd.f32 %v386, %v1139
    %v1147 = vxor.u32 %v1143, 2147483648
    %v1148 = vxor.u32 %v1144, 2147483648
    %v1149 = vxor.u32 %v1145, 2147483648
    %v1150 = vmul.f32 %v1147, 1.442695
    %v1151 = vpow.pop %v1150
    %v1152 = vmul.f32 %v1148, 1.442695
    %v1153 = vpow.pop %v1152
    %v1154 = vmul.f32 %v1149, 1.442695
    %v1155 = vpow.pop %v1154
    %v1156 = vadd.f32 %v1151, 1.0
    %v1157 = vadd.f32 %v1153, 1.0
    %v1158 = vadd.f32 %v1155, 1.0
    %v1159 = vrcp.pop %v1156
    %v1160 = vmul.f32 1.0, %v1159
    %v1161 = vrcp.pop %v1157
    %v1162 = vmul.f32 1.0, %v1161
    %v1163 = vrcp.pop %v1158
    %v1164 = vmul.f32 1.0, %v1163
    %v1165 = vtanh.pop %v1146
    %v1166 = vmul.f32 %v1162, %v1057
    %v1167 = vmul.f32 %v1160, %v1165
    %v1168 = vadd.f32 %v1166, %v1167
    %v1169 = vtanh.pop %v1168
    %v1170 = vmul.f32 %v1164, %v1169
    %v1171 = vpack.c.bf16 %v1170, %v1170
    %1172 = vmatprep.subr.bf16.mxu0 %v776
    %1173 = vmatpush1.bf16.msra.mxu0 %v775
    %1174 = vmatprep.subr.bf16.mxu0 %v780
    %1175 = vmatpush1.bf16.msra.mxu0 %v779
    %1176 = vmatprep.subr.bf16.mxu0 %v784
    %1177 = vmatpush1.bf16.msra.mxu0 %v783
    %1178 = vmatprep.subr.bf16.mxu0 %v788
    %1179 = vmatpush1.bf16.msra.mxu0 %v787
    %1180 = vmatprep.subr.bf16.mxu0 %v792
    %1181 = vmatpush1.bf16.msra.mxu0 %v791
    %1182 = vmatprep.subr.bf16.mxu0 %v796
    %1183 = vmatpush1.bf16.msra.mxu0 %v795
    %1184 = vmatprep.subr.bf16.mxu0 %v800
    %1185 = vmatpush1.bf16.msra.mxu0 %v799
    %1186 = vmatprep.subr.bf16.mxu0 %v804
    %1187 = vmatpush1.bf16.msra.mxu0 %v803
    %1188 = vmatprep.subr.bf16.mxu0 0
    %1189 = vmatpush1.bf16.msra.mxu0 0
    %1190 = vmatprep.subr.bf16.mxu0 0
    %1191 = vmatpush1.bf16.msra.mxu0 0
    %1192 = vmatprep.subr.bf16.mxu0 0
    %1193 = vmatpush1.bf16.msra.mxu0 0
    %1194 = vmatprep.subr.bf16.mxu0 0
    %1195 = vmatpush1.bf16.msra.mxu0 0
    %1196 = vmatprep.subr.bf16.mxu0 0
    %1197 = vmatpush1.bf16.msra.mxu0 0
    %1198 = vmatprep.subr.bf16.mxu0 0
    %1199 = vmatpush1.bf16.msra.mxu0 0
    %1200 = vmatprep.subr.bf16.mxu0 0
    %1201 = vmatpush1.bf16.msra.mxu0 0
    %1202 = vmatprep.subr.bf16.mxu0 0
    %1203 = vmatpush1.bf16.msra.mxu0 0
    %1204 = vmatprep.mubr.bf16.mxu0 0
    %1205 = vmatmul.mubr.bf16.gmra.mrb[0].mxu0 %v1171
    %v1206 = vpop.f32.mrb[0].mxu0
    %v1207 = vadd.f32 0.0, %v1206
    %v1208 = vpop.f32.mrb[0].mxu0
    %v1209 = vadd.f32 0.0, %v1208
    %v1210 = vpop.f32.mrb[0].mxu0
    %v1211 = vpop.f32.mrb[0].mxu0
    %1212 = vdwg.mxu0
    %1213 = vmatprep.subr.bf16.mxu0 %v778
    %1214 = vmatpush1.bf16.msra.mxu0 %v777
    %1215 = vmatprep.subr.bf16.mxu0 %v782
    %1216 = vmatpush1.bf16.msra.mxu0 %v781
    %1217 = vmatprep.subr.bf16.mxu0 %v786
    %1218 = vmatpush1.bf16.msra.mxu0 %v785
    %1219 = vmatprep.subr.bf16.mxu0 %v790
    %1220 = vmatpush1.bf16.msra.mxu0 %v789
    %1221 = vmatprep.subr.bf16.mxu0 %v794
    %1222 = vmatpush1.bf16.msra.mxu0 %v793
    %1223 = vmatprep.subr.bf16.mxu0 %v798
    %1224 = vmatpush1.bf16.msra.mxu0 %v797
    %1225 = vmatprep.subr.bf16.mxu0 %v802
    %1226 = vmatpush1.bf16.msra.mxu0 %v801
    %1227 = vmatprep.subr.bf16.mxu0 %v806
    %1228 = vmatpush1.bf16.msra.mxu0 %v805
    %1229 = vmatprep.subr.bf16.mxu0 0
    %1230 = vmatpush1.bf16.msra.mxu0 0
    %1231 = vmatprep.subr.bf16.mxu0 0
    %1232 = vmatpush1.bf16.msra.mxu0 0
    %1233 = vmatprep.subr.bf16.mxu0 0
    %1234 = vmatpush1.bf16.msra.mxu0 0
    %1235 = vmatprep.subr.bf16.mxu0 0
    %1236 = vmatpush1.bf16.msra.mxu0 0
    %1237 = vmatprep.subr.bf16.mxu0 0
    %1238 = vmatpush1.bf16.msra.mxu0 0
    %1239 = vmatprep.subr.bf16.mxu0 0
    %1240 = vmatpush1.bf16.msra.mxu0 0
    %1241 = vmatprep.subr.bf16.mxu0 0
    %1242 = vmatpush1.bf16.msra.mxu0 0
    %1243 = vmatprep.subr.bf16.mxu0 0
    %1244 = vmatpush1.bf16.msra.mxu0 0
    %1245 = vmatprep.mubr.bf16.mxu0 0
    %1246 = vmatmul.mubr.bf16.gmra.mrb[0].mxu0 %v1171
    %v1247 = vpop.f32.mrb[0].mxu0
    %v1248 = vadd.f32 0.0, %v1247
    %v1249 = vpop.f32.mrb[0].mxu0
    %v1250 = vadd.f32 0.0, %v1249
    %v1251 = vpop.f32.mrb[0].mxu0
    %v1252 = vpop.f32.mrb[0].mxu0
    %1253 = vdwg.mxu0
    %v1254 = vadd.f32 %v315, %v1207
    %v1255 = vadd.f32 %v317, %v1209
    %v1256 = vadd.f32 %v388, %v1248
    %v1257 = vadd.f32 %v390, %v1250
    %v1258 = vxor.u32 %v1254, 2147483648
    %v1259 = vxor.u32 %v1255, 2147483648
    %v1260 = vxor.u32 %v1256, 2147483648
    %v1261 = vmul.f32 %v1258, 1.442695
    %v1262 = vpow.pop %v1261
    %v1263 = vmul.f32 %v1259, 1.442695
    %v1264 = vpow.pop %v1263
    %v1265 = vmul.f32 %v1260, 1.442695
    %v1266 = vpow.pop %v1265
    %v1267 = vadd.f32 %v1262, 1.0
    %v1268 = vadd.f32 %v1264, 1.0
    %v1269 = vadd.f32 %v1266, 1.0
    %v1270 = vrcp.pop %v1267
    %v1271 = vmul.f32 1.0, %v1270
    %v1272 = vrcp.pop %v1268
    %v1273 = vmul.f32 1.0, %v1272
    %v1274 = vrcp.pop %v1269
    %v1275 = vmul.f32 1.0, %v1274
    %v1276 = vtanh.pop %v1257
    %v1277 = vmul.f32 %v1273, %v1168
    %v1278 = vmul.f32 %v1271, %v1276
    %v1279 = vadd.f32 %v1277, %v1278
    %v1280 = vtanh.pop %v1279
    %v1281 = vmul.f32 %v1275, %v1280
    %v1282 = vpack.c.bf16 %v1281, %v1281
    %1283 = vmatprep.subr.bf16.mxu0 %v776
    %1284 = vmatpush1.bf16.msra.mxu0 %v775
    %1285 = vmatprep.subr.bf16.mxu0 %v780
    %1286 = vmatpush1.bf16.msra.mxu0 %v779
    %1287 = vmatprep.subr.bf16.mxu0 %v784
    %1288 = vmatpush1.bf16.msra.mxu0 %v783
    %1289 = vmatprep.subr.bf16.mxu0 %v788
    %1290 = vmatpush1.bf16.msra.mxu0 %v787
    %1291 = vmatprep.subr.bf16.mxu0 %v792
    %1292 = vmatpush1.bf16.msra.mxu0 %v791
    %1293 = vmatprep.subr.bf16.mxu0 %v796
    %1294 = vmatpush1.bf16.msra.mxu0 %v795
    %1295 = vmatprep.subr.bf16.mxu0 %v800
    %1296 = vmatpush1.bf16.msra.mxu0 %v799
    %1297 = vmatprep.subr.bf16.mxu0 %v804
    %1298 = vmatpush1.bf16.msra.mxu0 %v803
    %1299 = vmatprep.subr.bf16.mxu0 0
    %1300 = vmatpush1.bf16.msra.mxu0 0
    %1301 = vmatprep.subr.bf16.mxu0 0
    %1302 = vmatpush1.bf16.msra.mxu0 0
    %1303 = vmatprep.subr.bf16.mxu0 0
    %1304 = vmatpush1.bf16.msra.mxu0 0
    %1305 = vmatprep.subr.bf16.mxu0 0
    %1306 = vmatpush1.bf16.msra.mxu0 0
    %1307 = vmatprep.subr.bf16.mxu0 0
    %1308 = vmatpush1.bf16.msra.mxu0 0
    %1309 = vmatprep.subr.bf16.mxu0 0
    %1310 = vmatpush1.bf16.msra.mxu0 0
    %1311 = vmatprep.subr.bf16.mxu0 0
    %1312 = vmatpush1.bf16.msra.mxu0 0
    %1313 = vmatprep.subr.bf16.mxu0 0
    %1314 = vmatpush1.bf16.msra.mxu0 0
    %1315 = vmatprep.mubr.bf16.mxu0 0
    %1316 = vmatmul.mubr.bf16.gmra.mrb[0].mxu0 %v1282
    %v1317 = vpop.f32.mrb[0].mxu0
    %v1318 = vadd.f32 0.0, %v1317
    %v1319 = vpop.f32.mrb[0].mxu0
    %v1320 = vadd.f32 0.0, %v1319
    %v1321 = vpop.f32.mrb[0].mxu0
    %v1322 = vpop.f32.mrb[0].mxu0
    %1323 = vdwg.mxu0
    %1324 = vmatprep.subr.bf16.mxu0 %v778
    %1325 = vmatpush1.bf16.msra.mxu0 %v777
    %1326 = vmatprep.subr.bf16.mxu0 %v782
    %1327 = vmatpush1.bf16.msra.mxu0 %v781
    %1328 = vmatprep.subr.bf16.mxu0 %v786
    %1329 = vmatpush1.bf16.msra.mxu0 %v785
    %1330 = vmatprep.subr.bf16.mxu0 %v790
    %1331 = vmatpush1.bf16.msra.mxu0 %v789
    %1332 = vmatprep.subr.bf16.mxu0 %v794
    %1333 = vmatpush1.bf16.msra.mxu0 %v793
    %1334 = vmatprep.subr.bf16.mxu0 %v798
    %1335 = vmatpush1.bf16.msra.mxu0 %v797
    %1336 = vmatprep.subr.bf16.mxu0 %v802
    %1337 = vmatpush1.bf16.msra.mxu0 %v801
    %1338 = vmatprep.subr.bf16.mxu0 %v806
    %1339 = vmatpush1.bf16.msra.mxu0 %v805
    %1340 = vmatprep.subr.bf16.mxu0 0
    %1341 = vmatpush1.bf16.msra.mxu0 0
    %1342 = vmatprep.subr.bf16.mxu0 0
    %1343 = vmatpush1.bf16.msra.mxu0 0
    %1344 = vmatprep.subr.bf16.mxu0 0
    %1345 = vmatpush1.bf16.msra.mxu0 0
    %1346 = vmatprep.subr.bf16.mxu0 0
    %1347 = vmatpush1.bf16.msra.mxu0 0
    %1348 = vmatprep.subr.bf16.mxu0 0
    %1349 = vmatpush1.bf16.msra.mxu0 0
    %1350 = vmatprep.subr.bf16.mxu0 0
    %1351 = vmatpush1.bf16.msra.mxu0 0
    %1352 = vmatprep.subr.bf16.mxu0 0
    %1353 = vmatpush1.bf16.msra.mxu0 0
    %1354 = vmatprep.subr.bf16.mxu0 0
    %1355 = vmatpush1.bf16.msra.mxu0 0
    %1356 = vmatprep.mubr.bf16.mxu0 0
    %1357 = vmatmul.mubr.bf16.gmra.mrb[0].mxu0 %v1282
    %v1358 = vpop.f32.mrb[0].mxu0
    %v1359 = vadd.f32 0.0, %v1358
    %v1360 = vpop.f32.mrb[0].mxu0
    %v1361 = vadd.f32 0.0, %v1360
    %v1362 = vpop.f32.mrb[0].mxu0
    %v1363 = vpop.f32.mrb[0].mxu0
    %1364 = vdwg.mxu0
    %v1365 = vadd.f32 %v321, %v1318
    %v1366 = vadd.f32 %v323, %v1320
    %v1367 = vadd.f32 %v394, %v1359
    %v1368 = vadd.f32 %v396, %v1361
    %v1369 = vxor.u32 %v1365, 2147483648
    %v1370 = vxor.u32 %v1366, 2147483648
    %v1371 = vxor.u32 %v1367, 2147483648
    %v1372 = vmul.f32 %v1369, 1.442695
    %v1373 = vpow.pop %v1372
    %v1374 = vmul.f32 %v1370, 1.442695
    %v1375 = vpow.pop %v1374
    %v1376 = vmul.f32 %v1371, 1.442695
    %v1377 = vpow.pop %v1376
    %v1378 = vadd.f32 %v1373, 1.0
    %v1379 = vadd.f32 %v1375, 1.0
    %v1380 = vadd.f32 %v1377, 1.0
    %v1381 = vrcp.pop %v1378
    %v1382 = vmul.f32 1.0, %v1381
    %v1383 = vrcp.pop %v1379
    %v1384 = vmul.f32 1.0, %v1383
    %v1385 = vrcp.pop %v1380
    %v1386 = vmul.f32 1.0, %v1385
    %v1387 = vtanh.pop %v1368
    %v1388 = vmul.f32 %v1384, %v1279
    %v1389 = vmul.f32 %v1382, %v1387
    %v1390 = vadd.f32 %v1388, %v1389
    %v1391 = vtanh.pop %v1390
    %v1392 = vmul.f32 %v1386, %v1391
    %v1393 = vpack.c.bf16 %v1392, %v1392
    %1394 = vmatprep.subr.bf16.mxu0 %v776
    %1395 = vmatpush1.bf16.msra.mxu0 %v775
    %1396 = vmatprep.subr.bf16.mxu0 %v780
    %1397 = vmatpush1.bf16.msra.mxu0 %v779
    %1398 = vmatprep.subr.bf16.mxu0 %v784
    %1399 = vmatpush1.bf16.msra.mxu0 %v783
    %1400 = vmatprep.subr.bf16.mxu0 %v788
    %1401 = vmatpush1.bf16.msra.mxu0 %v787
    %1402 = vmatprep.subr.bf16.mxu0 %v792
    %1403 = vmatpush1.bf16.msra.mxu0 %v791
    %1404 = vmatprep.subr.bf16.mxu0 %v796
    %1405 = vmatpush1.bf16.msra.mxu0 %v795
    %1406 = vmatprep.subr.bf16.mxu0 %v800
    %1407 = vmatpush1.bf16.msra.mxu0 %v799
    %1408 = vmatprep.subr.bf16.mxu0 %v804
    %1409 = vmatpush1.bf16.msra.mxu0 %v803
    %1410 = vmatprep.subr.bf16.mxu0 0
    %1411 = vmatpush1.bf16.msra.mxu0 0
    %1412 = vmatprep.subr.bf16.mxu0 0
    %1413 = vmatpush1.bf16.msra.mxu0 0
    %1414 = vmatprep.subr.bf16.mxu0 0
    %1415 = vmatpush1.bf16.msra.mxu0 0
    %1416 = vmatprep.subr.bf16.mxu0 0
    %1417 = vmatpush1.bf16.msra.mxu0 0
    %1418 = vmatprep.subr.bf16.mxu0 0
    %1419 = vmatpush1.bf16.msra.mxu0 0
    %1420 = vmatprep.subr.bf16.mxu0 0
    %1421 = vmatpush1.bf16.msra.mxu0 0
    %1422 = vmatprep.subr.bf16.mxu0 0
    %1423 = vmatpush1.bf16.msra.mxu0 0
    %1424 = vmatprep.subr.bf16.mxu0 0
    %1425 = vmatpush1.bf16.msra.mxu0 0
    %1426 = vmatprep.mubr.bf16.mxu0 0
    %1427 = vmatmul.mubr.bf16.gmra.mrb[0].mxu0 %v1393
    %v1428 = vpop.f32.mrb[0].mxu0
    %v1429 = vadd.f32 0.0, %v1428
    %v1430 = vpop.f32.mrb[0].mxu0
    %v1431 = vadd.f32 0.0, %v1430
    %v1432 = vpop.f32.mrb[0].mxu0
    %v1433 = vpop.f32.mrb[0].mxu0
    %1434 = vdwg.mxu0
    %1435 = vmatprep.subr.bf16.mxu0 %v778
    %1436 = vmatpush1.bf16.msra.mxu0 %v777
    %1437 = vmatprep.subr.bf16.mxu0 %v782
    %1438 = vmatpush1.bf16.msra.mxu0 %v781
    %1439 = vmatprep.subr.bf16.mxu0 %v786
    %1440 = vmatpush1.bf16.msra.mxu0 %v785
    %1441 = vmatprep.subr.bf16.mxu0 %v790
    %1442 = vmatpush1.bf16.msra.mxu0 %v789
    %1443 = vmatprep.subr.bf16.mxu0 %v794
    %1444 = vmatpush1.bf16.msra.mxu0 %v793
    %1445 = vmatprep.subr.bf16.mxu0 %v798
    %1446 = vmatpush1.bf16.msra.mxu0 %v797
    %1447 = vmatprep.subr.bf16.mxu0 %v802
    %1448 = vmatpush1.bf16.msra.mxu0 %v801
    %1449 = vmatprep.subr.bf16.mxu0 %v806
    %1450 = vmatpush1.bf16.msra.mxu0 %v805
    %1451 = vmatprep.subr.bf16.mxu0 0
    %1452 = vmatpush1.bf16.msra.mxu0 0
    %1453 = vmatprep.subr.bf16.mxu0 0
    %1454 = vmatpush1.bf16.msra.mxu0 0
    %1455 = vmatprep.subr.bf16.mxu0 0
    %1456 = vmatpush1.bf16.msra.mxu0 0
    %1457 = vmatprep.subr.bf16.mxu0 0
    %1458 = vmatpush1.bf16.msra.mxu0 0
    %1459 = vmatprep.subr.bf16.mxu0 0
    %1460 = vmatpush1.bf16.msra.mxu0 0
    %1461 = vmatprep.subr.bf16.mxu0 0
    %1462 = vmatpush1.bf16.msra.mxu0 0
    %1463 = vmatprep.subr.bf16.mxu0 0
    %1464 = vmatpush1.bf16.msra.mxu0 0
    %1465 = vmatprep.subr.bf16.mxu0 0
    %1466 = vmatpush1.bf16.msra.mxu0 0
    %1467 = vmatprep.mubr.bf16.mxu0 0
    %1468 = vmatmul.mubr.bf16.gmra.mrb[0].mxu0 %v1393
    %v1469 = vpop.f32.mrb[0].mxu0
    %v1470 = vadd.f32 0.0, %v1469
    %v1471 = vpop.f32.mrb[0].mxu0
    %v1472 = vadd.f32 0.0, %v1471
    %v1473 = vpop.f32.mrb[0].mxu0
    %v1474 = vpop.f32.mrb[0].mxu0
    %1475 = vdwg.mxu0
    %v1476 = vadd.f32 %v325, %v1429
    %v1477 = vadd.f32 %v327, %v1431
    %v1478 = vadd.f32 %v398, %v1470
    %v1479 = vadd.f32 %v400, %v1472
    %v1480 = vxor.u32 %v1476, 2147483648
    %v1481 = vxor.u32 %v1477, 2147483648
    %v1482 = vxor.u32 %v1478, 2147483648
    %v1483 = vmul.f32 %v1480, 1.442695
    %v1484 = vpow.pop %v1483
    %v1485 = vmul.f32 %v1481, 1.442695
    %v1486 = vpow.pop %v1485
    %v1487 = vmul.f32 %v1482, 1.442695
    %v1488 = vpow.pop %v1487
    %v1489 = vadd.f32 %v1484, 1.0
    %v1490 = vadd.f32 %v1486, 1.0
    %v1491 = vadd.f32 %v1488, 1.0
    %v1492 = vrcp.pop %v1489
    %v1493 = vmul.f32 1.0, %v1492
    %v1494 = vrcp.pop %v1490
    %v1495 = vmul.f32 1.0, %v1494
    %v1496 = vrcp.pop %v1491
    %v1497 = vmul.f32 1.0, %v1496
    %v1498 = vtanh.pop %v1479
    %v1499 = vmul.f32 %v1495, %v1390
    %v1500 = vmul.f32 %v1493, %v1498
    %v1501 = vadd.f32 %v1499, %v1500
    %v1502 = vtanh.pop %v1501
    %v1503 = vmul.f32 %v1497, %v1502
    %v1504 = vpack.c.bf16 %v1503, %v1503
    %1505 = vmatprep.subr.bf16.mxu0 %v776
    %1506 = vmatpush1.bf16.msra.mxu0 %v775
    %1507 = vmatprep.subr.bf16.mxu0 %v780
    %1508 = vmatpush1.bf16.msra.mxu0 %v779
    %1509 = vmatprep.subr.bf16.mxu0 %v784
    %1510 = vmatpush1.bf16.msra.mxu0 %v783
    %1511 = vmatprep.subr.bf16.mxu0 %v788
    %1512 = vmatpush1.bf16.msra.mxu0 %v787
    %1513 = vmatprep.subr.bf16.mxu0 %v792
    %1514 = vmatpush1.bf16.msra.mxu0 %v791
    %1515 = vmatprep.subr.bf16.mxu0 %v796
    %1516 = vmatpush1.bf16.msra.mxu0 %v795
    %1517 = vmatprep.subr.bf16.mxu0 %v800
    %1518 = vmatpush1.bf16.msra.mxu0 %v799
    %1519 = vmatprep.subr.bf16.mxu0 %v804
    %1520 = vmatpush1.bf16.msra.mxu0 %v803
    %1521 = vmatprep.subr.bf16.mxu0 0
    %1522 = vmatpush1.bf16.msra.mxu0 0
    %1523 = vmatprep.subr.bf16.mxu0 0
    %1524 = vmatpush1.bf16.msra.mxu0 0
    %1525 = vmatprep.subr.bf16.mxu0 0
    %1526 = vmatpush1.bf16.msra.mxu0 0
    %1527 = vmatprep.subr.bf16.mxu0 0
    %1528 = vmatpush1.bf16.msra.mxu0 0
    %1529 = vmatprep.subr.bf16.mxu0 0
    %1530 = vmatpush1.bf16.msra.mxu0 0
    %1531 = vmatprep.subr.bf16.mxu0 0
    %1532 = vmatpush1.bf16.msra.mxu0 0
    %1533 = vmatprep.subr.bf16.mxu0 0
    %1534 = vmatpush1.bf16.msra.mxu0 0
    %1535 = vmatprep.subr.bf16.mxu0 0
    %1536 = vmatpush1.bf16.msra.mxu0 0
    %1537 = vmatprep.mubr.bf16.mxu0 0
    %1538 = vmatmul.mubr.bf16.gmra.mrb[0].mxu0 %v1504
    %v1539 = vpop.f32.mrb[0].mxu0
    %v1540 = vadd.f32 0.0, %v1539
    %v1541 = vpop.f32.mrb[0].mxu0
    %v1542 = vadd.f32 0.0, %v1541
    %v1543 = vpop.f32.mrb[0].mxu0
    %v1544 = vpop.f32.mrb[0].mxu0
    %1545 = vdwg.mxu0
    %1546 = vmatprep.subr.bf16.mxu0 %v778
    %1547 = vmatpush1.bf16.msra.mxu0 %v777
    %1548 = vmatprep.subr.bf16.mxu0 %v782
    %1549 = vmatpush1.bf16.msra.mxu0 %v781
    %1550 = vmatprep.subr.bf16.mxu0 %v786
    %1551 = vmatpush1.bf16.msra.mxu0 %v785
    %1552 = vmatprep.subr.bf16.mxu0 %v790
    %1553 = vmatpush1.bf16.msra.mxu0 %v789
    %1554 = vmatprep.subr.bf16.mxu0 %v794
    %1555 = vmatpush1.bf16.msra.mxu0 %v793
    %1556 = vmatprep.subr.bf16.mxu0 %v798
    %1557 = vmatpush1.bf16.msra.mxu0 %v797
    %1558 = vmatprep.subr.bf16.mxu0 %v802
    %1559 = vmatpush1.bf16.msra.mxu0 %v801
    %1560 = vmatprep.subr.bf16.mxu0 %v806
    %1561 = vmatpush1.bf16.msra.mxu0 %v805
    %1562 = vmatprep.subr.bf16.mxu0 0
    %1563 = vmatpush1.bf16.msra.mxu0 0
    %1564 = vmatprep.subr.bf16.mxu0 0
    %1565 = vmatpush1.bf16.msra.mxu0 0
    %1566 = vmatprep.subr.bf16.mxu0 0
    %1567 = vmatpush1.bf16.msra.mxu0 0
    %1568 = vmatprep.subr.bf16.mxu0 0
    %1569 = vmatpush1.bf16.msra.mxu0 0
    %1570 = vmatprep.subr.bf16.mxu0 0
    %1571 = vmatpush1.bf16.msra.mxu0 0
    %1572 = vmatprep.subr.bf16.mxu0 0
    %1573 = vmatpush1.bf16.msra.mxu0 0
    %1574 = vmatprep.subr.bf16.mxu0 0
    %1575 = vmatpush1.bf16.msra.mxu0 0
    %1576 = vmatprep.subr.bf16.mxu0 0
    %1577 = vmatpush1.bf16.msra.mxu0 0
    %1578 = vmatprep.mubr.bf16.mxu0 0
    %1579 = vmatmul.mubr.bf16.gmra.mrb[0].mxu0 %v1504
    %v1580 = vpop.f32.mrb[0].mxu0
    %v1581 = vadd.f32 0.0, %v1580
    %v1582 = vpop.f32.mrb[0].mxu0
    %v1583 = vadd.f32 0.0, %v1582
    %v1584 = vpop.f32.mrb[0].mxu0
    %v1585 = vpop.f32.mrb[0].mxu0
    %1586 = vdwg.mxu0
    %v1587 = vadd.f32 %v331, %v1540
    %v1588 = vadd.f32 %v333, %v1542
    %v1589 = vadd.f32 %v404, %v1581
    %v1590 = vadd.f32 %v406, %v1583
    %v1591 = vxor.u32 %v1587, 2147483648
    %v1592 = vxor.u32 %v1588, 2147483648
    %v1593 = vxor.u32 %v1589, 2147483648
    %v1594 = vmul.f32 %v1591, 1.442695
    %v1595 = vpow.pop %v1594
    %v1596 = vmul.f32 %v1592, 1.442695
    %v1597 = vpow.pop %v1596
    %v1598 = vmul.f32 %v1593, 1.442695
    %v1599 = vpow.pop %v1598
    %v1600 = vadd.f32 %v1595, 1.0
    %v1601 = vadd.f32 %v1597, 1.0
    %v1602 = vadd.f32 %v1599, 1.0
    %v1603 = vrcp.pop %v1600
    %v1604 = vmul.f32 1.0, %v1603
    %v1605 = vrcp.pop %v1601
    %v1606 = vmul.f32 1.0, %v1605
    %v1607 = vrcp.pop %v1602
    %v1608 = vmul.f32 1.0, %v1607
    %v1609 = vtanh.pop %v1590
    %v1610 = vmul.f32 %v1606, %v1501
    %v1611 = vmul.f32 %v1604, %v1609
    %v1612 = vadd.f32 %v1610, %v1611
    %v1613 = vtanh.pop %v1612
    %v1614 = vmul.f32 %v1608, %v1613
    %v1615 = vpack.c.bf16 %v1614, %v1614
    %1616 = vmatprep.subr.bf16.mxu0 %v776
    %1617 = vmatpush1.bf16.msra.mxu0 %v775
    %1618 = vmatprep.subr.bf16.mxu0 %v780
    %1619 = vmatpush1.bf16.msra.mxu0 %v779
    %1620 = vmatprep.subr.bf16.mxu0 %v784
    %1621 = vmatpush1.bf16.msra.mxu0 %v783
    %1622 = vmatprep.subr.bf16.mxu0 %v788
    %1623 = vmatpush1.bf16.msra.mxu0 %v787
    %1624 = vmatprep.subr.bf16.mxu0 %v792
    %1625 = vmatpush1.bf16.msra.mxu0 %v791
    %1626 = vmatprep.subr.bf16.mxu0 %v796
    %1627 = vmatpush1.bf16.msra.mxu0 %v795
    %1628 = vmatprep.subr.bf16.mxu0 %v800
    %1629 = vmatpush1.bf16.msra.mxu0 %v799
    %1630 = vmatprep.subr.bf16.mxu0 %v804
    %1631 = vmatpush1.bf16.msra.mxu0 %v803
    %1632 = vmatprep.subr.bf16.mxu0 0
    %1633 = vmatpush1.bf16.msra.mxu0 0
    %1634 = vmatprep.subr.bf16.mxu0 0
    %1635 = vmatpush1.bf16.msra.mxu0 0
    %1636 = vmatprep.subr.bf16.mxu0 0
    %1637 = vmatpush1.bf16.msra.mxu0 0
    %1638 = vmatprep.subr.bf16.mxu0 0
    %1639 = vmatpush1.bf16.msra.mxu0 0
    %1640 = vmatprep.subr.bf16.mxu0 0
    %1641 = vmatpush1.bf16.msra.mxu0 0
    %1642 = vmatprep.subr.bf16.mxu0 0
    %1643 = vmatpush1.bf16.msra.mxu0 0
    %1644 = vmatprep.subr.bf16.mxu0 0
    %1645 = vmatpush1.bf16.msra.mxu0 0
    %1646 = vmatprep.subr.bf16.mxu0 0
    %1647 = vmatpush1.bf16.msra.mxu0 0
    %1648 = vmatprep.mubr.bf16.mxu0 0
    %1649 = vmatmul.mubr.bf16.gmra.mrb[0].mxu0 %v1615
    %v1650 = vpop.f32.mrb[0].mxu0
    %v1651 = vadd.f32 0.0, %v1650
    %v1652 = vpop.f32.mrb[0].mxu0
    %v1653 = vadd.f32 0.0, %v1652
    %v1654 = vpop.f32.mrb[0].mxu0
    %v1655 = vpop.f32.mrb[0].mxu0
    %1656 = vdwg.mxu0
    %1657 = vmatprep.subr.bf16.mxu0 %v778
    %1658 = vmatpush1.bf16.msra.mxu0 %v777
    %1659 = vmatprep.subr.bf16.mxu0 %v782
    %1660 = vmatpush1.bf16.msra.mxu0 %v781
    %1661 = vmatprep.subr.bf16.mxu0 %v786
    %1662 = vmatpush1.bf16.msra.mxu0 %v785
    %1663 = vmatprep.subr.bf16.mxu0 %v790
    %1664 = vmatpush1.bf16.msra.mxu0 %v789
    %1665 = vmatprep.subr.bf16.mxu0 %v794
    %1666 = vmatpush1.bf16.msra.mxu0 %v793
    %1667 = vmatprep.subr.bf16.mxu0 %v798
    %1668 = vmatpush1.bf16.msra.mxu0 %v797
    %1669 = vmatprep.subr.bf16.mxu0 %v802
    %1670 = vmatpush1.bf16.msra.mxu0 %v801
    %1671 = vmatprep.subr.bf16.mxu0 %v806
    %1672 = vmatpush1.bf16.msra.mxu0 %v805
    %1673 = vmatprep.subr.bf16.mxu0 0
    %1674 = vmatpush1.bf16.msra.mxu0 0
    %1675 = vmatprep.subr.bf16.mxu0 0
    %1676 = vmatpush1.bf16.msra.mxu0 0
    %1677 = vmatprep.subr.bf16.mxu0 0
    %1678 = vmatpush1.bf16.msra.mxu0 0
    %1679 = vmatprep.subr.bf16.mxu0 0
    %1680 = vmatpush1.bf16.msra.mxu0 0
    %1681 = vmatprep.subr.bf16.mxu0 0
    %1682 = vmatpush1.bf16.msra.mxu0 0
    %1683 = vmatprep.subr.bf16.mxu0 0
    %1684 = vmatpush1.bf16.msra.mxu0 0
    %1685 = vmatprep.subr.bf16.mxu0 0
    %1686 = vmatpush1.bf16.msra.mxu0 0
    %1687 = vmatprep.subr.bf16.mxu0 0
    %1688 = vmatpush1.bf16.msra.mxu0 0
    %1689 = vmatprep.mubr.bf16.mxu0 0
    %1690 = vmatmul.mubr.bf16.gmra.mrb[0].mxu0 %v1615
    %v1691 = vpop.f32.mrb[0].mxu0
    %v1692 = vadd.f32 0.0, %v1691
    %v1693 = vpop.f32.mrb[0].mxu0
    %v1694 = vadd.f32 0.0, %v1693
    %v1695 = vpop.f32.mrb[0].mxu0
    %v1696 = vpop.f32.mrb[0].mxu0
    %1697 = vdwg.mxu0
    %v1698 = vadd.f32 %v335, %v1651
    %v1699 = vadd.f32 %v337, %v1653
    %v1700 = vadd.f32 %v408, %v1692
    %v1701 = vadd.f32 %v410, %v1694
    %v1702 = vxor.u32 %v1698, 2147483648
    %v1703 = vxor.u32 %v1699, 2147483648
    %v1704 = vxor.u32 %v1700, 2147483648
    %v1705 = vmul.f32 %v1702, 1.442695
    %v1706 = vpow.pop %v1705
    %v1707 = vmul.f32 %v1703, 1.442695
    %v1708 = vpow.pop %v1707
    %v1709 = vmul.f32 %v1704, 1.442695
    %v1710 = vpow.pop %v1709
    %v1711 = vadd.f32 %v1706, 1.0
    %v1712 = vadd.f32 %v1708, 1.0
    %v1713 = vadd.f32 %v1710, 1.0
    %v1714 = vrcp.pop %v1711
    %v1715 = vmul.f32 1.0, %v1714
    %v1716 = vrcp.pop %v1712
    %v1717 = vmul.f32 1.0, %v1716
    %v1718 = vrcp.pop %v1713
    %v1719 = vmul.f32 1.0, %v1718
    %v1720 = vtanh.pop %v1701
    %v1721 = vmul.f32 %v1717, %v1612
    %v1722 = vmul.f32 %v1715, %v1720
    %v1723 = vadd.f32 %v1721, %v1722
    %v1724 = vtanh.pop %v1723
    %v1725 = vmul.f32 %v1719, %v1724
    %v1758 = vunpack.c.l.b16 %v647
    %v1759 = vunpack.c.h.b16 %v647
    %v1760 = vunpack.c.l.b16 %v648
    %v1761 = vunpack.c.h.b16 %v648
    %v1762 = vunpack.c.l.b16 %v649
    %v1763 = vunpack.c.h.b16 %v649
    %v1764 = vunpack.c.l.b16 %v650
    %v1765 = vunpack.c.h.b16 %v650
    %v1766 = vunpack.c.l.b16 %v651
    %v1767 = vunpack.c.h.b16 %v651
    %v1768 = vunpack.c.l.b16 %v652
    %v1769 = vunpack.c.h.b16 %v652
    %v1770 = vunpack.c.l.b16 %v653
    %v1771 = vunpack.c.h.b16 %v653
    %v1772 = vunpack.c.l.b16 %v654
    %v1773 = vunpack.c.h.b16 %v654
    %v1774 = vunpack.c.l.b16 %v655
    %v1775 = vunpack.c.h.b16 %v655
    %v1776 = vunpack.c.l.b16 %v656
    %v1777 = vunpack.c.h.b16 %v656
    %v1778 = vunpack.c.l.b16 %v657
    %v1779 = vunpack.c.h.b16 %v657
    %v1780 = vunpack.c.l.b16 %v658
    %v1781 = vunpack.c.h.b16 %v658
    %v1782 = vunpack.c.l.b16 %v659
    %v1783 = vunpack.c.h.b16 %v659
    %v1784 = vunpack.c.l.b16 %v660
    %v1785 = vunpack.c.h.b16 %v660
    %v1786 = vunpack.c.l.b16 %v661
    %v1787 = vunpack.c.h.b16 %v661
    %v1788 = vunpack.c.l.b16 %v662
    %v1789 = vunpack.c.h.b16 %v662
    %v1790 = vunpack.c.l.b16 %v663
    %v1791 = vunpack.c.h.b16 %v663
    %v1792 = vunpack.c.l.b16 %v664
    %v1793 = vunpack.c.h.b16 %v664
    %v1794 = vunpack.c.l.b16 %v665
    %v1795 = vunpack.c.h.b16 %v665
    %v1796 = vunpack.c.l.b16 %v666
    %v1797 = vunpack.c.h.b16 %v666
    %v1798 = vunpack.c.l.b16 %v667
    %v1799 = vunpack.c.h.b16 %v667
    %v1800 = vunpack.c.l.b16 %v668
    %v1801 = vunpack.c.h.b16 %v668
    %v1802 = vunpack.c.l.b16 %v669
    %v1803 = vunpack.c.h.b16 %v669
    %v1804 = vunpack.c.l.b16 %v670
    %v1805 = vunpack.c.h.b16 %v670
    %v1806 = vunpack.c.l.b16 %v671
    %v1807 = vunpack.c.h.b16 %v671
    %v1808 = vunpack.c.l.b16 %v672
    %v1809 = vunpack.c.h.b16 %v672
    %v1810 = vunpack.c.l.b16 %v673
    %v1811 = vunpack.c.h.b16 %v673
    %v1812 = vunpack.c.l.b16 %v674
    %v1813 = vunpack.c.h.b16 %v674
    %v1814 = vunpack.c.l.b16 %v675
    %v1815 = vunpack.c.h.b16 %v675
    %v1816 = vunpack.c.l.b16 %v676
    %v1817 = vunpack.c.h.b16 %v676
    %v1818 = vunpack.c.l.b16 %v677
    %v1819 = vunpack.c.h.b16 %v677
    %v1820 = vunpack.c.l.b16 %v678
    %v1821 = vunpack.c.h.b16 %v678
    %v1822 = vpack.c.b16 %v1762, %v1758
    %v1823 = vpack.c.b16 %v1763, %v1759
    %v1824 = vpack.c.b16 %v1764, %v1760
    %v1825 = vpack.c.b16 %v1765, %v1761
    %v1826 = vpack.c.b16 %v1770, %v1766
    %v1827 = vpack.c.b16 %v1771, %v1767
    %v1828 = vpack.c.b16 %v1772, %v1768
    %v1829 = vpack.c.b16 %v1773, %v1769
    %v1830 = vpack.c.b16 %v1778, %v1774
    %v1831 = vpack.c.b16 %v1779, %v1775
    %v1832 = vpack.c.b16 %v1780, %v1776
    %v1833 = vpack.c.b16 %v1781, %v1777
    %v1834 = vpack.c.b16 %v1786, %v1782
    %v1835 = vpack.c.b16 %v1787, %v1783
    %v1836 = vpack.c.b16 %v1788, %v1784
    %v1837 = vpack.c.b16 %v1789, %v1785
    %v1838 = vpack.c.b16 %v1794, %v1790
    %v1839 = vpack.c.b16 %v1795, %v1791
    %v1840 = vpack.c.b16 %v1796, %v1792
    %v1841 = vpack.c.b16 %v1797, %v1793
    %v1842 = vpack.c.b16 %v1802, %v1798
    %v1843 = vpack.c.b16 %v1803, %v1799
    %v1844 = vpack.c.b16 %v1804, %v1800
    %v1845 = vpack.c.b16 %v1805, %v1801
    %v1846 = vpack.c.b16 %v1810, %v1806
    %v1847 = vpack.c.b16 %v1811, %v1807
    %v1848 = vpack.c.b16 %v1812, %v1808
    %v1849 = vpack.c.b16 %v1813, %v1809
    %v1850 = vpack.c.b16 %v1818, %v1814
    %v1851 = vpack.c.b16 %v1819, %v1815
    %v1852 = vpack.c.b16 %v1820, %v1816
    %v1853 = vpack.c.b16 %v1821, %v1817
    %1886 = vmatprep.subr.bf16.mxu0 %v1823
    %1887 = vmatpush1.bf16.msra.mxu0 %v1822
    %1888 = vmatprep.subr.bf16.mxu0 %v1827
    %1889 = vmatpush1.bf16.msra.mxu0 %v1826
    %1890 = vmatprep.subr.bf16.mxu0 %v1831
    %1891 = vmatpush1.bf16.msra.mxu0 %v1830
    %1892 = vmatprep.subr.bf16.mxu0 %v1835
    %1893 = vmatpush1.bf16.msra.mxu0 %v1834
    %1894 = vmatprep.subr.bf16.mxu0 %v1839
    %1895 = vmatpush1.bf16.msra.mxu0 %v1838
    %1896 = vmatprep.subr.bf16.mxu0 %v1843
    %1897 = vmatpush1.bf16.msra.mxu0 %v1842
    %1898 = vmatprep.subr.bf16.mxu0 %v1847
    %1899 = vmatpush1.bf16.msra.mxu0 %v1846
    %1900 = vmatprep.subr.bf16.mxu0 %v1851
    %1901 = vmatpush1.bf16.msra.mxu0 %v1850
    %1902 = vmatprep.subr.bf16.mxu0 0
    %1903 = vmatpush1.bf16.msra.mxu0 0
    %1904 = vmatprep.subr.bf16.mxu0 0
    %1905 = vmatpush1.bf16.msra.mxu0 0
    %1906 = vmatprep.subr.bf16.mxu0 0
    %1907 = vmatpush1.bf16.msra.mxu0 0
    %1908 = vmatprep.subr.bf16.mxu0 0
    %1909 = vmatpush1.bf16.msra.mxu0 0
    %1910 = vmatprep.subr.bf16.mxu0 0
    %1911 = vmatpush1.bf16.msra.mxu0 0
    %1912 = vmatprep.subr.bf16.mxu0 0
    %1913 = vmatpush1.bf16.msra.mxu0 0
    %1914 = vmatprep.subr.bf16.mxu0 0
    %1915 = vmatpush1.bf16.msra.mxu0 0
    %1916 = vmatprep.subr.bf16.mxu0 0
    %1917 = vmatpush1.bf16.msra.mxu0 0
    %1918 = vmatprep.mubr.bf16.mxu0 0
    %1919 = vmatmul.mubr.bf16.gmra.mrb[0].mxu0 0
    %v1920 = vpop.f32.mrb[0].mxu0
    %v1921 = vadd.f32 0.0, %v1920
    %v1922 = vpop.f32.mrb[0].mxu0
    %v1923 = vadd.f32 0.0, %v1922
    %v1924 = vpop.f32.mrb[0].mxu0
    %v1925 = vpop.f32.mrb[0].mxu0
    %1926 = vdwg.mxu0
    %1927 = vmatprep.subr.bf16.mxu0 %v1825
    %1928 = vmatpush1.bf16.msra.mxu0 %v1824
    %1929 = vmatprep.subr.bf16.mxu0 %v1829
    %1930 = vmatpush1.bf16.msra.mxu0 %v1828
    %1931 = vmatprep.subr.bf16.mxu0 %v1833
    %1932 = vmatpush1.bf16.msra.mxu0 %v1832
    %1933 = vmatprep.subr.bf16.mxu0 %v1837
    %1934 = vmatpush1.bf16.msra.mxu0 %v1836
    %1935 = vmatprep.subr.bf16.mxu0 %v1841
    %1936 = vmatpush1.bf16.msra.mxu0 %v1840
    %1937 = vmatprep.subr.bf16.mxu0 %v1845
    %1938 = vmatpush1.bf16.msra.mxu0 %v1844
    %1939 = vmatprep.subr.bf16.mxu0 %v1849
    %1940 = vmatpush1.bf16.msra.mxu0 %v1848
    %1941 = vmatprep.subr.bf16.mxu0 %v1853
    %1942 = vmatpush1.bf16.msra.mxu0 %v1852
    %1943 = vmatprep.subr.bf16.mxu0 0
    %1944 = vmatpush1.bf16.msra.mxu0 0
    %1945 = vmatprep.subr.bf16.mxu0 0
    %1946 = vmatpush1.bf16.msra.mxu0 0
    %1947 = vmatprep.subr.bf16.mxu0 0
    %1948 = vmatpush1.bf16.msra.mxu0 0
    %1949 = vmatprep.subr.bf16.mxu0 0
    %1950 = vmatpush1.bf16.msra.mxu0 0
    %1951 = vmatprep.subr.bf16.mxu0 0
    %1952 = vmatpush1.bf16.msra.mxu0 0
    %1953 = vmatprep.subr.bf16.mxu0 0
    %1954 = vmatpush1.bf16.msra.mxu0 0
    %1955 = vmatprep.subr.bf16.mxu0 0
    %1956 = vmatpush1.bf16.msra.mxu0 0
    %1957 = vmatprep.subr.bf16.mxu0 0
    %1958 = vmatpush1.bf16.msra.mxu0 0
    %1959 = vmatprep.mubr.bf16.mxu0 0
    %1960 = vmatmul.mubr.bf16.gmra.mrb[0].mxu0 0
    %v1961 = vpop.f32.mrb[0].mxu0
    %v1962 = vadd.f32 0.0, %v1961
    %v1963 = vpop.f32.mrb[0].mxu0
    %v1964 = vadd.f32 0.0, %v1963
    %v1965 = vpop.f32.mrb[0].mxu0
    %v1966 = vpop.f32.mrb[0].mxu0
    %1967 = vdwg.mxu0
    %v1968 = vadd.f32 %v568, %v1921
    %v1969 = vadd.f32 %v570, %v1923
    %v1970 = vadd.f32 %v609, %v1962
    %v1971 = vadd.f32 %v611, %v1964
    %v1972 = vxor.u32 %v1968, 2147483648
    %v1973 = vxor.u32 %v1969, 2147483648
    %v1974 = vxor.u32 %v1970, 2147483648
    %v1975 = vmul.f32 %v1972, 1.442695
    %v1976 = vpow.pop %v1975
    %v1977 = vmul.f32 %v1973, 1.442695
    %v1978 = vpow.pop %v1977
    %v1979 = vmul.f32 %v1974, 1.442695
    %v1980 = vpow.pop %v1979
    %v1981 = vadd.f32 %v1976, 1.0
    %v1982 = vadd.f32 %v1978, 1.0
    %v1983 = vadd.f32 %v1980, 1.0
    %v1984 = vrcp.pop %v1981
    %v1985 = vmul.f32 1.0, %v1984
    %v1986 = vrcp.pop %v1982
    %v1987 = vmul.f32 1.0, %v1986
    %v1988 = vrcp.pop %v1983
    %v1989 = vmul.f32 1.0, %v1988
    %v1990 = vtanh.pop %v1971
    %v1991 = vmul.f32 %v1987, 0.0
    %v1992 = vmul.f32 %v1985, %v1990
    %v1993 = vadd.f32 %v1991, %v1992
    %v1994 = vtanh.pop %v1993
    %v1995 = vmul.f32 %v1989, %v1994
    %v1996 = vpack.c.bf16 %v1725, %v1725
    %v1997 = vld [vmem:[#allocation9] sm:$0xf]
    %v1998 = vld [vmem:[#allocation9 + $0x4] sm:$0xf]
    %v1999 = vld [vmem:[#allocation9 + $0x8] sm:$0xf]
    %v2000 = vld [vmem:[#allocation9 + $0xc] sm:$0xf]
    %v2001 = vld [vmem:[#allocation9 + $0x10] sm:$0xf]
    %v2002 = vld [vmem:[#allocation9 + $0x14] sm:$0xf]
    %v2003 = vld [vmem:[#allocation9 + $0x18] sm:$0xf]
    %v2004 = vld [vmem:[#allocation9 + $0x1c] sm:$0xf]
    %v2005 = vld [vmem:[#allocation9 + $0x20] sm:$0xf]
    %v2006 = vld [vmem:[#allocation9 + $0x24] sm:$0xf]
    %v2007 = vld [vmem:[#allocation9 + $0x28] sm:$0xf]
    %v2008 = vld [vmem:[#allocation9 + $0x2c] sm:$0xf]
    %v2009 = vld [vmem:[#allocation9 + $0x30] sm:$0xf]
    %v2010 = vld [vmem:[#allocation9 + $0x34] sm:$0xf]
    %v2011 = vld [vmem:[#allocation9 + $0x38] sm:$0xf]
    %v2012 = vld [vmem:[#allocation9 + $0x3c] sm:$0xf]
    %v2013 = vpack.c.bf16 %v1995, %v1995
    %v2014 = vld [vmem:[#allocation9 + $0x40] sm:$0xf]
    %v2015 = vld [vmem:[#allocation9 + $0x44] sm:$0xf]
    %v2016 = vld [vmem:[#allocation9 + $0x48] sm:$0xf]
    %v2017 = vld [vmem:[#allocation9 + $0x4c] sm:$0xf]
    %v2018 = vld [vmem:[#allocation9 + $0x50] sm:$0xf]
    %v2019 = vld [vmem:[#allocation9 + $0x54] sm:$0xf]
    %v2020 = vld [vmem:[#allocation9 + $0x58] sm:$0xf]
    %v2021 = vld [vmem:[#allocation9 + $0x5c] sm:$0xf]
    %v2022 = vld [vmem:[#allocation9 + $0x60] sm:$0xf]
    %v2023 = vld [vmem:[#allocation9 + $0x64] sm:$0xf]
    %v2024 = vld [vmem:[#allocation9 + $0x68] sm:$0xf]
    %v2025 = vld [vmem:[#allocation9 + $0x6c] sm:$0xf]
    %v2026 = vld [vmem:[#allocation9 + $0x70] sm:$0xf]
    %v2027 = vld [vmem:[#allocation9 + $0x74] sm:$0xf]
    %v2028 = vld [vmem:[#allocation9 + $0x78] sm:$0xf]
    %v2029 = vld [vmem:[#allocation9 + $0x7c] sm:$0xf]
    %v2046 = vunpack.c.l.b16 %v2014
    %v2047 = vunpack.c.l.b16 %v2015
    %v2048 = vunpack.c.l.b16 %v2016
    %v2049 = vunpack.c.l.b16 %v2017
    %v2050 = vunpack.c.l.b16 %v2018
    %v2051 = vunpack.c.l.b16 %v2019
    %v2052 = vunpack.c.l.b16 %v2020
    %v2053 = vunpack.c.l.b16 %v2021
    %v2054 = vunpack.c.l.b16 %v2022
    %v2055 = vunpack.c.l.b16 %v2023
    %v2056 = vunpack.c.l.b16 %v2024
    %v2057 = vunpack.c.l.b16 %v2025
    %v2058 = vunpack.c.l.b16 %v2026
    %v2059 = vunpack.c.l.b16 %v2027
    %v2060 = vunpack.c.l.b16 %v2028
    %v2061 = vunpack.c.l.b16 %v2029
    %v2062 = vpack.c.b16 %v2047, %v2046
    %v2063 = vpack.c.b16 %v2049, %v2048
    %v2064 = vpack.c.b16 %v2051, %v2050
    %v2065 = vpack.c.b16 %v2053, %v2052
    %v2066 = vpack.c.b16 %v2055, %v2054
    %v2067 = vpack.c.b16 %v2057, %v2056
    %v2068 = vpack.c.b16 %v2059, %v2058
    %v2069 = vpack.c.b16 %v2061, %v2060
    %2078 = vmatprep.subr.bf16.mxu0 0
    %2079 = vmatpush1.bf16.msra.mxu0 %v2062
    %2080 = vmatprep.subr.bf16.mxu0 0
    %2081 = vmatpush1.bf16.msra.mxu0 %v2063
    %2082 = vmatprep.subr.bf16.mxu0 0
    %2083 = vmatpush1.bf16.msra.mxu0 %v2064
    %2084 = vmatprep.subr.bf16.mxu0 0
    %2085 = vmatpush1.bf16.msra.mxu0 %v2065
    %2086 = vmatprep.subr.bf16.mxu0 0
    %2087 = vmatpush1.bf16.msra.mxu0 %v2066
    %2088 = vmatprep.subr.bf16.mxu0 0
    %2089 = vmatpush1.bf16.msra.mxu0 %v2067
    %2090 = vmatprep.subr.bf16.mxu0 0
    %2091 = vmatpush1.bf16.msra.mxu0 %v2068
    %2092 = vmatprep.subr.bf16.mxu0 0
    %2093 = vmatpush1.bf16.msra.mxu0 %v2069
    %2094 = vmatprep.subr.bf16.mxu0 0
    %2095 = vmatpush1.bf16.msra.mxu0 0
    %2096 = vmatprep.subr.bf16.mxu0 0
    %2097 = vmatpush1.bf16.msra.mxu0 0
    %2098 = vmatprep.subr.bf16.mxu0 0
    %2099 = vmatpush1.bf16.msra.mxu0 0
    %2100 = vmatprep.subr.bf16.mxu0 0
    %2101 = vmatpush1.bf16.msra.mxu0 0
    %2102 = vmatprep.subr.bf16.mxu0 0
    %2103 = vmatpush1.bf16.msra.mxu0 0
    %2104 = vmatprep.subr.bf16.mxu0 0
    %2105 = vmatpush1.bf16.msra.mxu0 0
    %2106 = vmatprep.subr.bf16.mxu0 0
    %2107 = vmatpush1.bf16.msra.mxu0 0
    %2108 = vmatprep.subr.bf16.mxu0 0
    %2109 = vmatpush1.bf16.msra.mxu0 0
    %2110 = vmatprep.mubr.bf16.mxu0 0
    %2111 = vmatmul.mubr.bf16.gmra.mrb[0].mxu0 %v2013
    %v2112 = vpop.f32.mrb[0].mxu0
    %v2113 = vadd.f32 0.0, %v2112
    %v2114 = vpop.f32.mrb[0].mxu0
    %v2115 = vpop.f32.mrb[0].mxu0
    %v2116 = vpop.f32.mrb[0].mxu0
    %2117 = vdwg.mxu0
    %v2134 = vunpack.c.l.b16 %v1997
    %v2135 = vunpack.c.l.b16 %v1998
    %v2136 = vunpack.c.l.b16 %v1999
    %v2137 = vunpack.c.l.b16 %v2000
    %v2138 = vunpack.c.l.b16 %v2001
    %v2139 = vunpack.c.l.b16 %v2002
    %v2140 = vunpack.c.l.b16 %v2003
    %v2141 = vunpack.c.l.b16 %v2004
    %v2142 = vunpack.c.l.b16 %v2005
    %v2143 = vunpack.c.l.b16 %v2006
    %v2144 = vunpack.c.l.b16 %v2007
    %v2145 = vunpack.c.l.b16 %v2008
    %v2146 = vunpack.c.l.b16 %v2009
    %v2147 = vunpack.c.l.b16 %v2010
    %v2148 = vunpack.c.l.b16 %v2011
    %v2149 = vunpack.c.l.b16 %v2012
    %v2150 = vpack.c.b16 %v2135, %v2134
    %v2151 = vpack.c.b16 %v2137, %v2136
    %v2152 = vpack.c.b16 %v2139, %v2138
    %v2153 = vpack.c.b16 %v2141, %v2140
    %v2154 = vpack.c.b16 %v2143, %v2142
    %v2155 = vpack.c.b16 %v2145, %v2144
    %v2156 = vpack.c.b16 %v2147, %v2146
    %v2157 = vpack.c.b16 %v2149, %v2148
    %2166 = vmatprep.subr.bf16.mxu0 0
    %2167 = vmatpush1.bf16.msra.mxu0 %v2150
    %2168 = vmatprep.subr.bf16.mxu0 0
    %2169 = vmatpush1.bf16.msra.mxu0 %v2151
    %2170 = vmatprep.subr.bf16.mxu0 0
    %2171 = vmatpush1.bf16.msra.mxu0 %v2152
    %2172 = vmatprep.subr.bf16.mxu0 0
    %2173 = vmatpush1.bf16.msra.mxu0 %v2153
    %2174 = vmatprep.subr.bf16.mxu0 0
    %2175 = vmatpush1.bf16.msra.mxu0 %v2154
    %2176 = vmatprep.subr.bf16.mxu0 0
    %2177 = vmatpush1.bf16.msra.mxu0 %v2155
    %2178 = vmatprep.subr.bf16.mxu0 0
    %2179 = vmatpush1.bf16.msra.mxu0 %v2156
    %2180 = vmatprep.subr.bf16.mxu0 0
    %2181 = vmatpush1.bf16.msra.mxu0 %v2157
    %2182 = vmatprep.subr.bf16.mxu0 0
    %2183 = vmatpush1.bf16.msra.mxu0 0
    %2184 = vmatprep.subr.bf16.mxu0 0
    %2185 = vmatpush1.bf16.msra.mxu0 0
    %2186 = vmatprep.subr.bf16.mxu0 0
    %2187 = vmatpush1.bf16.msra.mxu0 0
    %2188 = vmatprep.subr.bf16.mxu0 0
    %2189 = vmatpush1.bf16.msra.mxu0 0
    %2190 = vmatprep.subr.bf16.mxu0 0
    %2191 = vmatpush1.bf16.msra.mxu0 0
    %2192 = vmatprep.subr.bf16.mxu0 0
    %2193 = vmatpush1.bf16.msra.mxu0 0
    %2194 = vmatprep.subr.bf16.mxu0 0
    %2195 = vmatpush1.bf16.msra.mxu0 0
    %2196 = vmatprep.subr.bf16.mxu0 0
    %2197 = vmatpush1.bf16.msra.mxu0 0
    %2198 = vmatprep.mubr.bf16.mxu0 0
    %2199 = vmatmul.mubr.bf16.gmra.mrb[0].mxu0 %v1996
    %v2200 = vpop.f32.mrb[0].mxu0
    %v2201 = vadd.f32 %v2113, %v2200
    %v2202 = vpop.f32.mrb[0].mxu0
    %v2203 = vpop.f32.mrb[0].mxu0
    %v2204 = vpop.f32.mrb[0].mxu0
    %2205 = vdwg.mxu0
    %v2206 = vld [vmem:[%s8] sm:$0x1]
    %v2208 = vlaneseq
    %v2209 = vshrl.u32 %v2208, 7
    %v2210 = vsub.s32 0, %v2209
    %v2211 = vrot.slane %v2206, %v2210
    %v2213 = vadd.f32 %v2201, %v2211
    %v2214 = vmax.f32 %v2213, 0.0
    %v2215 = vpack.c.bf16 %v2214, %v2214
    %v2216 = vld [vmem:[%s9] sm:$0xf]
    %v2217 = vld [vmem:[%s9 + $0x4] sm:$0xf]
    %v2218 = vld [vmem:[%s9 + $0x8] sm:$0xf]
    %v2219 = vld [vmem:[%s9 + $0xc] sm:$0xf]
    %v2220 = vld [vmem:[%s9 + $0x10] sm:$0xf]
    %v2221 = vld [vmem:[%s9 + $0x14] sm:$0xf]
    %v2222 = vld [vmem:[%s9 + $0x18] sm:$0xf]
    %v2223 = vld [vmem:[%s9 + $0x1c] sm:$0xf]
    %v2224 = vld [vmem:[%s9 + $0x20] sm:$0xf]
    %v2225 = vld [vmem:[%s9 + $0x24] sm:$0xf]
    %v2226 = vld [vmem:[%s9 + $0x28] sm:$0xf]
    %v2227 = vld [vmem:[%s9 + $0x2c] sm:$0xf]
    %v2228 = vld [vmem:[%s9 + $0x30] sm:$0xf]
    %v2229 = vld [vmem:[%s9 + $0x34] sm:$0xf]
    %v2230 = vld [vmem:[%s9 + $0x38] sm:$0xf]
    %v2231 = vld [vmem:[%s9 + $0x3c] sm:$0xf]
    %v2232 = vld [vmem:[%s10] sm:$0x1]
    %v2234 = vlaneseq
    %v2235 = vshrl.u32 %v2234, 7
    %v2236 = vsub.s32 0, %v2235
    %v2237 = vrot.slane %v2232, %v2236
    %v2255 = vunpack.c.l.b16 %v2216
    %v2256 = vunpack.c.l.b16 %v2217
    %v2257 = vunpack.c.l.b16 %v2218
    %v2258 = vunpack.c.l.b16 %v2219
    %v2259 = vunpack.c.l.b16 %v2220
    %v2260 = vunpack.c.l.b16 %v2221
    %v2261 = vunpack.c.l.b16 %v2222
    %v2262 = vunpack.c.l.b16 %v2223
    %v2263 = vunpack.c.l.b16 %v2224
    %v2264 = vunpack.c.l.b16 %v2225
    %v2265 = vunpack.c.l.b16 %v2226
    %v2266 = vunpack.c.l.b16 %v2227
    %v2267 = vunpack.c.l.b16 %v2228
    %v2268 = vunpack.c.l.b16 %v2229
    %v2269 = vunpack.c.l.b16 %v2230
    %v2270 = vunpack.c.l.b16 %v2231
    %v2271 = vpack.c.b16 %v2256, %v2255
    %v2272 = vpack.c.b16 %v2258, %v2257
    %v2273 = vpack.c.b16 %v2260, %v2259
    %v2274 = vpack.c.b16 %v2262, %v2261
    %v2275 = vpack.c.b16 %v2264, %v2263
    %v2276 = vpack.c.b16 %v2266, %v2265
    %v2277 = vpack.c.b16 %v2268, %v2267
    %v2278 = vpack.c.b16 %v2270, %v2269
    %2287 = vmatprep.subr.bf16.mxu0 0
    %2288 = vmatpush1.bf16.msra.mxu0 %v2271
    %2289 = vmatprep.subr.bf16.mxu0 0
    %2290 = vmatpush1.bf16.msra.mxu0 %v2272
    %2291 = vmatprep.subr.bf16.mxu0 0
    %2292 = vmatpush1.bf16.msra.mxu0 %v2273
    %2293 = vmatprep.subr.bf16.mxu0 0
    %2294 = vmatpush1.bf16.msra.mxu0 %v2274
    %2295 = vmatprep.subr.bf16.mxu0 0
    %2296 = vmatpush1.bf16.msra.mxu0 %v2275
    %2297 = vmatprep.subr.bf16.mxu0 0
    %2298 = vmatpush1.bf16.msra.mxu0 %v2276
    %2299 = vmatprep.subr.bf16.mxu0 0
    %2300 = vmatpush1.bf16.msra.mxu0 %v2277
    %2301 = vmatprep.subr.bf16.mxu0 0
    %2302 = vmatpush1.bf16.msra.mxu0 %v2278
    %2303 = vmatprep.subr.bf16.mxu0 0
    %2304 = vmatpush1.bf16.msra.mxu0 0
    %2305 = vmatprep.subr.bf16.mxu0 0
    %2306 = vmatpush1.bf16.msra.mxu0 0
    %2307 = vmatprep.subr.bf16.mxu0 0
    %2308 = vmatpush1.bf16.msra.mxu0 0
    %2309 = vmatprep.subr.bf16.mxu0 0
    %2310 = vmatpush1.bf16.msra.mxu0 0
    %2311 = vmatprep.subr.bf16.mxu0 0
    %2312 = vmatpush1.bf16.msra.mxu0 0
    %2313 = vmatprep.subr.bf16.mxu0 0
    %2314 = vmatpush1.bf16.msra.mxu0 0
    %2315 = vmatprep.subr.bf16.mxu0 0
    %2316 = vmatpush1.bf16.msra.mxu0 0
    %2317 = vmatprep.subr.bf16.mxu0 0
    %2318 = vmatpush1.bf16.msra.mxu0 0
    %2319 = vmatprep.mubr.bf16.mxu0 0
    %2320 = vmatmul.mubr.bf16.gmra.mrb[0].mxu0 %v2215
    %v2321 = vpop.f32.mrb[0].mxu0
    %v2322 = vadd.f32 %v2237, %v2321
    %v2323 = vpop.f32.mrb[0].mxu0
    %v2324 = vpop.f32.mrb[0].mxu0
    %v2325 = vpop.f32.mrb[0].mxu0
    %2326 = vdwg.mxu0
    %2327 = vst [vmem:[%s11] sm:$0xff] %v2322
    // Predicated region
    $region66: #{emotion_lstm_forward.1} parent=1 // pred_check
      _
    $region67: #{emotion_lstm_forward.1} parent=1 // pred_check_branch
      %2329 = sbr.rel (0) target = $region69
    $region68: #{emotion_lstm_forward.1} parent=1 // pred_region
      _
    $region69: #{emotion_lstm_forward.1} parent=1 // pred_fallthru
      _
    // Predicated region
    $region70: #{emotion_lstm_forward.1} parent=1 // pred_check
      _
    $region71: #{emotion_lstm_forward.1} parent=1 // pred_check_branch
      %2331 = sbr.rel (0) target = $region73
    $region72: #{emotion_lstm_forward.1} parent=1 // pred_region
      _
    $region73: #{emotion_lstm_forward.1} parent=1 // pred_fallthru
      _
    %2332 = vsyncpa [#allocation3], 1
    %2333 = vsyncpa [#allocation5], 1
    %2334 = vsyncpa [#allocation8], 1

</llo_original>
